<compile_context>
chip_gen: v6e
topology: v6e:2x2x1
jax: 0.10.0
libtpu: 0.0.40
codegen_flags: <defaults>
</compile_context>

<pallas_src>
import numpy as np
import jax
import jax.numpy as jnp
from jax.experimental import pallas as pl
from jax.experimental.pallas import tpu as pltpu
from jax.scipy.special import erf as _erf_ref

# ---------------------------------------------------------------------------
# Shared geometry (batch 2, input 16x16 -> every stage's per-image grid is 8x8
# plus one zero pad row/col -> 9x9 = 81 lanes per image).
# ---------------------------------------------------------------------------
N_BATCH = 2
G = 9                      # padded per-image grid side (8 valid + 1 pad row/col)
IMG = G * G                # 81
M_VALID = N_BATCH * IMG    # 162 valid lanes
M_PAD = 256                # lane-padded buffer width
SQRT_HALF = 0.7071067811865476

# phase/shift bookkeeping shared by weight packing and the kernel
_KY_OF = {(0, 0): 1, (1, 0): 2, (1, 1): 0}     # (out_parity, shift) -> kernel tap
_YC = ((0, 0), (1, 0), (0, 1))                 # (src phase, shift) combos, layer 3


def _terms_l3(c, alpha):
    """Contributions to output row-phase (c, alpha): list of (src_phase, shift, ky)."""
    if alpha == 0:
        return [(c, 0, 1)]
    return [(c, 0, 2), (1 - c, c, 0)]


# ---------------------------------------------------------------------------
# The fused kernel
# ---------------------------------------------------------------------------
def _erf_approx(x):
    # Abramowitz & Stegun 7.1.26 (max abs err ~1.5e-7); exp() runs on the EUP.
    # TODO(synk): switch to jax.lax.erf once its Mosaic lowering is guaranteed.
    p = 0.3275911
    a1, a2, a3, a4, a5 = (0.254829592, -0.284496736, 1.421413741,
                          -1.453152027, 1.061405429)
    ax = jnp.abs(x)
    t = 1.0 / (1.0 + p * ax)
    poly = t * (a1 + t * (a2 + t * (a3 + t * (a4 + t * a5))))
    y = 1.0 - poly * jnp.exp(-ax * ax)
    return jnp.where(x >= 0.0, y, -y)


def _fused_forward_kernel(xq_ref, l1w_ref, b1_ref, l2w_ref, b2_ref,
                          l3w_ref, b3_ref, mask_ref, out_ref,
                          v7_ref, v9_ref):
    f32 = jnp.float32
    m = mask_ref[:, 0:M_VALID] > 0.5                       # (1, 162) validity mask

    # zero the padded scratches / output so pad rows/cols and tails read as 0
    v7_ref[...] = jnp.zeros_like(v7_ref)
    v9_ref[...] = jnp.zeros_like(v9_ref)
    out_ref[...] = jnp.zeros_like(out_ref)

    # ---- layer 1: conv1(3x3,s2,p1) + folded conv2(1x1) + erf-GELU ------------
    # input is pre-split into 4 phase images of the padded 18x18 input.
    acc = jnp.zeros((8, M_VALID), f32)
    for di in range(3):
        for dj in range(3):
            ph = (di % 2) * 2 + (dj % 2)
            off = (di // 2) * G + (dj // 2)
            acc = acc + jnp.dot(
                l1w_ref[(di * 3 + dj) * 8:(di * 3 + dj + 1) * 8, :],
                xq_ref[ph * 8:(ph + 1) * 8, off:off + M_VALID],
                preferred_element_type=f32)
    v2 = acc + b1_ref[...]                                  # (8, 162)
    v7 = (0.5 * v2) * (1.0 + _erf_approx(v2 * SQRT_HALF))
    v7_ref[:, 0:M_VALID] = jnp.where(m, v7, 0.0)

    # ---- layer 2: folded convT3(3x3,s2,p1,op1) + convT4(1x1), phase split ----
    # output rows r = (alpha*2+beta)*4 + co  (alpha,beta = output pixel parity)
    acc = jnp.zeros((16, M_VALID), f32)
    for di in range(2):
        for dj in range(2):
            g = di * 2 + dj
            off = di * G + dj
            acc = acc + jnp.dot(
                l2w_ref[g * 16:(g + 1) * 16, :],
                v7_ref[:, off:off + M_VALID],
                preferred_element_type=f32)
    v9 = acc + b2_ref[...]                                  # (16, 162)
    v9_ref[:, 0:M_VALID] = jnp.where(m, v9, 0.0)

    # ---- layer 3: convT5(3x3,s2,p1,op1) -> 16 output phase images ------------
    # output rows r = c*8 + alpha*4 + d*2 + beta   (y = 4u + 2c + alpha, ...)
    acc = jnp.zeros((16, M_VALID), f32)
    for yi, (cp, du) in enumerate(_YC):
        for xi, (dp, dv) in enumerate(_YC):
            qq = yi * 3 + xi
            off = du * G + dv
            rs = (cp * 2 + dp) * 4
            acc = acc + jnp.dot(
                l3w_ref[qq * 16:(qq + 1) * 16, :],
                v9_ref[rs:rs + 4, off:off + M_VALID],
                preferred_element_type=f32)
    out = acc + b3_ref[...]
    out_ref[:, 0:M_VALID] = jnp.where(m, out, 0.0)


def fused_forward(xq, packed):
    return pl.pallas_call(
        _fused_forward_kernel,
        out_shape=jax.ShapeDtypeStruct((16, M_PAD), jnp.float32),
        in_specs=[pl.BlockSpec(memory_space=pltpu.MemorySpace.VMEM)] * 8,
        out_specs=pl.BlockSpec(memory_space=pltpu.MemorySpace.VMEM),
        scratch_shapes=[pltpu.VMEM((8, M_PAD), jnp.float32),    # v7 (post-GELU)
                        pltpu.VMEM((16, M_PAD), jnp.float32)],  # v9 (4 phases x 4 ch)
    )(xq, packed["l1w"], packed["b1"], packed["l2w"], packed["b2"],
      packed["l3w"], packed["b3"], packed["mask"])


# ---------------------------------------------------------------------------
# One-time weight prep: fold the 1x1 convs, regroup taps by (phase, shift).
# ---------------------------------------------------------------------------
def pack_params(params):
    w1 = np.asarray(params["w1"], np.float32)                 # (16, 8, 3, 3)
    b1 = np.asarray(params["b1"], np.float32)
    w2 = np.asarray(params["w2"], np.float32)[:, :, 0, 0]     # (8, 16)
    b2 = np.asarray(params["b2"], np.float32)
    w3 = np.asarray(params["w3"], np.float32)                 # (8, 8, 3, 3) ConvT
    b3 = np.asarray(params["b3"], np.float32)
    w4 = np.asarray(params["w4"], np.float32)[:, :, 0, 0]     # (8, 4)
    b4 = np.asarray(params["b4"], np.float32)
    w5 = np.asarray(params["w5"], np.float32)                 # (4, 1, 3, 3) ConvT
    b5 = np.asarray(params["b5"], np.float32)

    # conv2(conv1(x)) == conv(x; w12, b12)   (no nonlinearity between them)
    w12 = np.einsum("om,mikl->oikl", w2, w1)                  # (8, 8, 3, 3)
    b12 = w2 @ b1 + b2
    # convT4(convT3(x)) == convT(x; w34, b34)
    w34 = np.einsum("imkl,mo->iokl", w3, w4)                  # (8, 4, 3, 3)
    b34 = b3 @ w4 + b4

    # layer 1: one (Cout, Cin) block per tap, tap-major
    l1w = np.zeros((9 * 8, 8), np.float32)
    for di in range(3):
        for dj in range(3):
            l1w[(di * 3 + dj) * 8:(di * 3 + dj + 1) * 8, :] = w12[:, :, di, dj]

    # layer 2: group taps by input shift (di, dj) in {0,1}^2
    l2w = np.zeros((4 * 16, 8), np.float32)
    for alpha in range(2):
        for beta in range(2):
            for di in range(2):
                for dj in range(2):
                    ky = _KY_OF.get((alpha, di))
                    kx = _KY_OF.get((beta, dj))
                    if ky is None or kx is None:
                        continue
                    g = di * 2 + dj
                    for co in range(4):
                        r = (alpha * 2 + beta) * 4 + co
                        l2w[g * 16 + r, :] = w34[:, co, ky, kx]
    b2r = np.tile(b34, 4).reshape(16, 1)

    # layer 3: group by (source v9 phase, shift) combos _YC x _YC
    yc_idx = {pair: i for i, pair in enumerate(_YC)}
    l3w = np.zeros((9 * 16, 4), np.float32)
    for c in range(2):
        for alpha in range(2):
            for d in range(2):
                for beta in range(2):
                    r = c * 8 + alpha * 4 + d * 2 + beta
                    for (cp, du, ky) in _terms_l3(c, alpha):
                        for (dp, dv, kx) in _terms_l3(d, beta):
                            qq = yc_idx[(cp, du)] * 3 + yc_idx[(dp, dv)]
                            l3w[qq * 16 + r, :] = w5[:, 0, ky, kx]

    # validity mask of the shared flattened 9-grid layout
    p = np.arange(M_PAD)
    q = p % IMG
    mask = ((p < M_VALID) & (q // G < G - 1) & (q % G < G - 1)).astype(np.float32)

    packed = {"l1w": l1w, "b1": b12.reshape(8, 1),
              "l2w": l2w, "b2": b2r,
              "l3w": l3w, "b3": b5.reshape(1, 1),
              "mask": mask.reshape(1, M_PAD)}
    return {k: jnp.asarray(v, jnp.float32) for k, v in packed.items()}


# ---------------------------------------------------------------------------
# Forward wrapper: only input phase-split and final phase interleave run in XLA.
# ---------------------------------------------------------------------------
@jax.jit
def model_forward(x_nchw, packed):
    n, cin, h, w = x_nchw.shape
    assert (n, cin, h, w) == (N_BATCH, 8, 16, 16)
    # input glue (once, on the raw 8 KB input): pad + split into 4 phase images
    xpad = jnp.pad(x_nchw, ((0, 0), (0, 0), (1, 1), (1, 1)))          # (n,8,18,18)
    phases = jnp.stack([xpad[:, :, a::2, b::2]
                        for a in range(2) for b in range(2)], axis=0)  # (4,n,8,9,9)
    xq = jnp.transpose(phases, (0, 2, 1, 3, 4)).reshape(4 * 8, n * IMG)
    xq = jnp.pad(xq, ((0, 0), (0, M_PAD - n * IMG)))                   # (32, 256)

    out_ph = fused_forward(xq, packed)                                 # (16, 256)

    # output glue: interleave 16 phase images back into (n, 1, 32, 32)
    ph = out_ph[:, :n * IMG].reshape(2, 2, 2, 2, n, G, G)[..., :8, :8]
    y = jnp.transpose(ph, (4, 5, 0, 1, 6, 2, 3)).reshape(n, 32, 32)
    return y[:, None, :, :]


# ---------------------------------------------------------------------------
# Parameter init and a pure-JAX reference (lax convs) for validation.
# ---------------------------------------------------------------------------
def init_params(key):
    ks = jax.random.split(key, 10)

    def w(k, shape, fan_in):
        return jax.random.normal(k, shape, jnp.float32) / np.sqrt(fan_in)

    return {
        "w1": w(ks[0], (16, 8, 3, 3), 8 * 9),
        "b1": 0.01 * jax.random.normal(ks[1], (16,), jnp.float32),
        "w2": w(ks[2], (8, 16, 1, 1), 16),
        "b2": 0.01 * jax.random.normal(ks[3], (8,), jnp.float32),
        "w3": w(ks[4], (8, 8, 3, 3), 8 * 9),   # see TODO(synk) about conv3 channels
        "b3": 0.01 * jax.random.normal(ks[5], (8,), jnp.float32),
        "w4": w(ks[6], (8, 4, 1, 1), 8),
        "b4": 0.01 * jax.random.normal(ks[7], (4,), jnp.float32),
        "w5": w(ks[8], (4, 1, 3, 3), 4 * 9),
        "b5": 0.01 * jax.random.normal(ks[9], (1,), jnp.float32),
    }


def reference_forward(x, params):
    dn = ("NCHW", "OIHW", "NCHW")
    prec = jax.lax.Precision.HIGHEST

    def conv(x, w, b, stride, pad):
        y = jax.lax.conv_general_dilated(x, w, (stride, stride),
                                         [(pad, pad), (pad, pad)],
                                         dimension_numbers=dn, precision=prec)
        return y + b[None, :, None, None]

    def convT(x, w, b, k, stride, pad, outpad):
        w_f = jnp.transpose(w[:, :, ::-1, ::-1], (1, 0, 2, 3))
        lo, hi = k - 1 - pad, k - 1 - pad + outpad
        y = jax.lax.conv_general_dilated(x, w_f, (1, 1), [(lo, hi), (lo, hi)],
                                         lhs_dilation=(stride, stride),
                                         dimension_numbers=dn, precision=prec)
        return y + b[None, :, None, None]

    v2 = conv(conv(x, params["w1"], params["b1"], 2, 1),
              params["w2"], params["b2"], 1, 0)
    v7 = 0.5 * v2 * (1.0 + _erf_ref(v2 * SQRT_HALF))
    v8 = convT(v7, params["w3"], params["b3"], 3, 2, 1, 1)
    v9 = convT(v8, params["w4"], params["b4"], 1, 1, 0, 0)
    return convT(v9, params["w5"], params["b5"], 3, 2, 1, 1)


if __name__ == "__main__":
    key = jax.random.PRNGKey(0)
    k_x, k_p = jax.random.split(key)
    x1 = jax.random.normal(k_x, (2, 8, 16, 16), jnp.float32)   # NCHW input
    params = init_params(k_p)
    packed = pack_params(params)                               # one-time weight prep

    out = jax.block_until_ready(model_forward(x1, packed))
    assert out.shape == (2, 1, 32, 32), out.shape
    assert bool(jnp.all(jnp.isfinite(out)))

    ref = jax.block_until_ready(reference_forward(x1, params))
    err = float(jnp.max(jnp.abs(out - ref)))
    assert err < 2e-2, f"max abs error vs reference: {err}"
    print("KERNEL_OK")
</pallas_src>

<mosaic_0001>
module attributes {stable_mosaic.version = 11 : i64} {
  func.func @_fused_forward_kernel(%arg0: memref<32x256xf32, #tpu.memory_space<vmem>>, %arg1: memref<72x8xf32, #tpu.memory_space<vmem>>, %arg2: memref<8x1xf32, #tpu.memory_space<vmem>>, %arg3: memref<64x8xf32, #tpu.memory_space<vmem>>, %arg4: memref<16x1xf32, #tpu.memory_space<vmem>>, %arg5: memref<144x4xf32, #tpu.memory_space<vmem>>, %arg6: memref<1x1xf32, #tpu.memory_space<vmem>>, %arg7: memref<1x256xf32, #tpu.memory_space<vmem>>, %arg8: memref<16x256xf32, #tpu.memory_space<vmem>>, %arg9: memref<8x256xf32, #tpu.memory_space<vmem>>, %arg10: memref<16x256xf32, #tpu.memory_space<vmem>>) attributes {dimension_semantics = [], scalar_prefetch = 0 : i64, scratch_operands = 2 : i64, tpu.core_type = #tpu.core_type<tc>} {
    %c0 = arith.constant 0 : index
    %c0_0 = arith.constant 0 : index
    %0 = vector.load %arg7[%c0, %c0_0] : memref<1x256xf32, #tpu.memory_space<vmem>>, vector<1x162xf32>
    %cst = arith.constant 5.000000e-01 : f32
    %1 = vector.broadcast %cst : f32 to vector<1x162xf32>
    %2 = arith.cmpf ogt, %0, %1 : vector<1x162xf32>
    %cst_1 = arith.constant 0.000000e+00 : f32
    %3 = vector.broadcast %cst_1 : f32 to vector<8x256xf32>
    %c0_2 = arith.constant 0 : index
    %c0_3 = arith.constant 0 : index
    %4 = vector.load %arg9[%c0_2, %c0_3] : memref<8x256xf32, #tpu.memory_space<vmem>>, vector<8x256xf32>
    tpu.vector_store %arg9[%c0_2, %c0_3], %3 {strides = array<i32>} : memref<8x256xf32, #tpu.memory_space<vmem>>, vector<8x256xf32>,
    %cst_4 = arith.constant 0.000000e+00 : f32
    %5 = vector.broadcast %cst_4 : f32 to vector<16x256xf32>
    %c0_5 = arith.constant 0 : index
    %c0_6 = arith.constant 0 : index
    %6 = vector.load %arg10[%c0_5, %c0_6] : memref<16x256xf32, #tpu.memory_space<vmem>>, vector<16x256xf32>
    tpu.vector_store %arg10[%c0_5, %c0_6], %5 {strides = array<i32>} : memref<16x256xf32, #tpu.memory_space<vmem>>, vector<16x256xf32>,
    %cst_7 = arith.constant 0.000000e+00 : f32
    %7 = vector.broadcast %cst_7 : f32 to vector<16x256xf32>
    %c0_8 = arith.constant 0 : index
    %c0_9 = arith.constant 0 : index
    %8 = vector.load %arg8[%c0_8, %c0_9] : memref<16x256xf32, #tpu.memory_space<vmem>>, vector<16x256xf32>
    tpu.vector_store %arg8[%c0_8, %c0_9], %7 {strides = array<i32>} : memref<16x256xf32, #tpu.memory_space<vmem>>, vector<16x256xf32>,
    %cst_10 = arith.constant 0.000000e+00 : f32
    %9 = vector.broadcast %cst_10 : f32 to vector<8x162xf32>
    %c0_11 = arith.constant 0 : index
    %c0_12 = arith.constant 0 : index
    %10 = vector.load %arg1[%c0_11, %c0_12] : memref<72x8xf32, #tpu.memory_space<vmem>>, vector<8x8xf32>
    %c0_13 = arith.constant 0 : index
    %c0_14 = arith.constant 0 : index
    %11 = vector.load %arg0[%c0_13, %c0_14] : memref<32x256xf32, #tpu.memory_space<vmem>>, vector<8x162xf32>
    %cst_15 = arith.constant dense<0.000000e+00> : vector<8x162xf32>
    %12 = tpu.matmul %10, %11, %cst_15 {dimension_numbers = #tpu.dot_dimension_numbers<[1], [0], [0], [1], [0, 0, 1, 1], [], []>} : vector<8x8xf32>, vector<8x162xf32>, vector<8x162xf32> -> vector<8x162xf32>
    %13 = arith.addf %9, %12 : vector<8x162xf32>
    %c8 = arith.constant 8 : index
    %c0_16 = arith.constant 0 : index
    %14 = vector.load %arg1[%c8, %c0_16] : memref<72x8xf32, #tpu.memory_space<vmem>>, vector<8x8xf32>
    %c8_17 = arith.constant 8 : index
    %c0_18 = arith.constant 0 : index
    %15 = vector.load %arg0[%c8_17, %c0_18] : memref<32x256xf32, #tpu.memory_space<vmem>>, vector<8x162xf32>
    %cst_19 = arith.constant dense<0.000000e+00> : vector<8x162xf32>
    %16 = tpu.matmul %14, %15, %cst_19 {dimension_numbers = #tpu.dot_dimension_numbers<[1], [0], [0], [1], [0, 0, 1, 1], [], []>} : vector<8x8xf32>, vector<8x162xf32>, vector<8x162xf32> -> vector<8x162xf32>
    %17 = arith.addf %13, %16 : vector<8x162xf32>
    %c16 = arith.constant 16 : index
    %c0_20 = arith.constant 0 : index
    %18 = vector.load %arg1[%c16, %c0_20] : memref<72x8xf32, #tpu.memory_space<vmem>>, vector<8x8xf32>
    %c0_21 = arith.constant 0 : index
    %c1 = arith.constant 1 : index
    %19 = vector.load %arg0[%c0_21, %c1] : memref<32x256xf32, #tpu.memory_space<vmem>>, vector<8x162xf32>
    %cst_22 = arith.constant dense<0.000000e+00> : vector<8x162xf32>
    %20 = tpu.matmul %18, %19, %cst_22 {dimension_numbers = #tpu.dot_dimension_numbers<[1], [0], [0], [1], [0, 0, 1, 1], [], []>} : vector<8x8xf32>, vector<8x162xf32>, vector<8x162xf32> -> vector<8x162xf32>
    %21 = arith.addf %17, %20 : vector<8x162xf32>
    %c24 = arith.constant 24 : index
    %c0_23 = arith.constant 0 : index
    %22 = vector.load %arg1[%c24, %c0_23] : memref<72x8xf32, #tpu.memory_space<vmem>>, vector<8x8xf32>
    %c16_24 = arith.constant 16 : index
    %c0_25 = arith.constant 0 : index
    %23 = vector.load %arg0[%c16_24, %c0_25] : memref<32x256xf32, #tpu.memory_space<vmem>>, vector<8x162xf32>
    %cst_26 = arith.constant dense<0.000000e+00> : vector<8x162xf32>
    %24 = tpu.matmul %22, %23, %cst_26 {dimension_numbers = #tpu.dot_dimension_numbers<[1], [0], [0], [1], [0, 0, 1, 1], [], []>} : vector<8x8xf32>, vector<8x162xf32>, vector<8x162xf32> -> vector<8x162xf32>
    %25 = arith.addf %21, %24 : vector<8x162xf32>
    %c32 = arith.constant 32 : index
    %c0_27 = arith.constant 0 : index
    %26 = vector.load %arg1[%c32, %c0_27] : memref<72x8xf32, #tpu.memory_space<vmem>>, vector<8x8xf32>
    %c24_28 = arith.constant 24 : index
    %c0_29 = arith.constant 0 : index
    %27 = vector.load %arg0[%c24_28, %c0_29] : memref<32x256xf32, #tpu.memory_space<vmem>>, vector<8x162xf32>
    %cst_30 = arith.constant dense<0.000000e+00> : vector<8x162xf32>
    %28 = tpu.matmul %26, %27, %cst_30 {dimension_numbers = #tpu.dot_dimension_numbers<[1], [0], [0], [1], [0, 0, 1, 1], [], []>} : vector<8x8xf32>, vector<8x162xf32>, vector<8x162xf32> -> vector<8x162xf32>
    %29 = arith.addf %25, %28 : vector<8x162xf32>
    %c40 = arith.constant 40 : index
    %c0_31 = arith.constant 0 : index
    %30 = vector.load %arg1[%c40, %c0_31] : memref<72x8xf32, #tpu.memory_space<vmem>>, vector<8x8xf32>
    %c16_32 = arith.constant 16 : index
    %c1_33 = arith.constant 1 : index
    %31 = vector.load %arg0[%c16_32, %c1_33] : memref<32x256xf32, #tpu.memory_space<vmem>>, vector<8x162xf32>
    %cst_34 = arith.constant dense<0.000000e+00> : vector<8x162xf32>
    %32 = tpu.matmul %30, %31, %cst_34 {dimension_numbers = #tpu.dot_dimension_numbers<[1], [0], [0], [1], [0, 0, 1, 1], [], []>} : vector<8x8xf32>, vector<8x162xf32>, vector<8x162xf32> -> vector<8x162xf32>
    %33 = arith.addf %29, %32 : vector<8x162xf32>
    %c48 = arith.constant 48 : index
    %c0_35 = arith.constant 0 : index
    %34 = vector.load %arg1[%c48, %c0_35] : memref<72x8xf32, #tpu.memory_space<vmem>>, vector<8x8xf32>
    %c0_36 = arith.constant 0 : index
    %c9 = arith.constant 9 : index
    %35 = vector.load %arg0[%c0_36, %c9] : memref<32x256xf32, #tpu.memory_space<vmem>>, vector<8x162xf32>
    %cst_37 = arith.constant dense<0.000000e+00> : vector<8x162xf32>
    %36 = tpu.matmul %34, %35, %cst_37 {dimension_numbers = #tpu.dot_dimension_numbers<[1], [0], [0], [1], [0, 0, 1, 1], [], []>} : vector<8x8xf32>, vector<8x162xf32>, vector<8x162xf32> -> vector<8x162xf32>
    %37 = arith.addf %33, %36 : vector<8x162xf32>
    %c56 = arith.constant 56 : index
    %c0_38 = arith.constant 0 : index
    %38 = vector.load %arg1[%c56, %c0_38] : memref<72x8xf32, #tpu.memory_space<vmem>>, vector<8x8xf32>
    %c8_39 = arith.constant 8 : index
    %c9_40 = arith.constant 9 : index
    %39 = vector.load %arg0[%c8_39, %c9_40] : memref<32x256xf32, #tpu.memory_space<vmem>>, vector<8x162xf32>
    %cst_41 = arith.constant dense<0.000000e+00> : vector<8x162xf32>
    %40 = tpu.matmul %38, %39, %cst_41 {dimension_numbers = #tpu.dot_dimension_numbers<[1], [0], [0], [1], [0, 0, 1, 1], [], []>} : vector<8x8xf32>, vector<8x162xf32>, vector<8x162xf32> -> vector<8x162xf32>
    %41 = arith.addf %37, %40 : vector<8x162xf32>
    %c64 = arith.constant 64 : index
    %c0_42 = arith.constant 0 : index
    %42 = vector.load %arg1[%c64, %c0_42] : memref<72x8xf32, #tpu.memory_space<vmem>>, vector<8x8xf32>
    %c0_43 = arith.constant 0 : index
    %c10 = arith.constant 10 : index
    %43 = vector.load %arg0[%c0_43, %c10] : memref<32x256xf32, #tpu.memory_space<vmem>>, vector<8x162xf32>
    %cst_44 = arith.constant dense<0.000000e+00> : vector<8x162xf32>
    %44 = tpu.matmul %42, %43, %cst_44 {dimension_numbers = #tpu.dot_dimension_numbers<[1], [0], [0], [1], [0, 0, 1, 1], [], []>} : vector<8x8xf32>, vector<8x162xf32>, vector<8x162xf32> -> vector<8x162xf32>
    %45 = arith.addf %41, %44 : vector<8x162xf32>
    %c0_45 = arith.constant 0 : index
    %c0_46 = arith.constant 0 : index
    %46 = vector.load %arg2[%c0_45, %c0_46] : memref<8x1xf32, #tpu.memory_space<vmem>>, vector<8x1xf32>
    %47 = vector.broadcast %46 : vector<8x1xf32> to vector<8x162xf32>
    %48 = arith.addf %45, %47 : vector<8x162xf32>
    %cst_47 = arith.constant 5.000000e-01 : f32
    %49 = vector.broadcast %cst_47 : f32 to vector<8x162xf32>
    %50 = arith.mulf %49, %48 : vector<8x162xf32>
    %cst_48 = arith.constant 0.707106769 : f32
    %51 = vector.broadcast %cst_48 : f32 to vector<8x162xf32>
    %52 = arith.mulf %48, %51 : vector<8x162xf32>
    %53 = math.absf %52 : vector<8x162xf32>
    %cst_49 = arith.constant 0.327591091 : f32
    %54 = vector.broadcast %cst_49 : f32 to vector<8x162xf32>
    %55 = arith.mulf %54, %53 : vector<8x162xf32>
    %cst_50 = arith.constant 1.000000e+00 : f32
    %56 = vector.broadcast %cst_50 : f32 to vector<8x162xf32>
    %57 = arith.addf %56, %55 : vector<8x162xf32>
    %cst_51 = arith.constant 1.000000e+00 : f32
    %58 = vector.broadcast %cst_51 : f32 to vector<8x162xf32>
    %59 = arith.divf %58, %57 : vector<8x162xf32>
    %cst_52 = arith.constant 1.06140542 : f32
    %60 = vector.broadcast %cst_52 : f32 to vector<8x162xf32>
    %61 = arith.mulf %59, %60 : vector<8x162xf32>
    %cst_53 = arith.constant -1.45315206 : f32
    %62 = vector.broadcast %cst_53 : f32 to vector<8x162xf32>
    %63 = arith.addf %62, %61 : vector<8x162xf32>
    %64 = arith.mulf %59, %63 : vector<8x162xf32>
    %cst_54 = arith.constant 1.42141378 : f32
    %65 = vector.broadcast %cst_54 : f32 to vector<8x162xf32>
    %66 = arith.addf %65, %64 : vector<8x162xf32>
    %67 = arith.mulf %59, %66 : vector<8x162xf32>
    %cst_55 = arith.constant -0.284496725 : f32
    %68 = vector.broadcast %cst_55 : f32 to vector<8x162xf32>
    %69 = arith.addf %68, %67 : vector<8x162xf32>
    %70 = arith.mulf %59, %69 : vector<8x162xf32>
    %cst_56 = arith.constant 0.254829586 : f32
    %71 = vector.broadcast %cst_56 : f32 to vector<8x162xf32>
    %72 = arith.addf %71, %70 : vector<8x162xf32>
    %73 = arith.mulf %59, %72 : vector<8x162xf32>
    %cst_57 = arith.constant 0.000000e+00 : f32
    %74 = vector.broadcast %cst_57 : f32 to vector<8x162xf32>
    %75 = arith.subf %74, %53 : vector<8x162xf32>
    %76 = arith.mulf %75, %53 : vector<8x162xf32>
    %77 = math.exp %76 : vector<8x162xf32>
    %78 = arith.mulf %73, %77 : vector<8x162xf32>
    %cst_58 = arith.constant 1.000000e+00 : f32
    %79 = vector.broadcast %cst_58 : f32 to vector<8x162xf32>
    %80 = arith.subf %79, %78 : vector<8x162xf32>
    %cst_59 = arith.constant 0.000000e+00 : f32
    %81 = vector.broadcast %cst_59 : f32 to vector<8x162xf32>
    %82 = arith.cmpf oge, %52, %81 : vector<8x162xf32>
    %cst_60 = arith.constant 0.000000e+00 : f32
    %83 = vector.broadcast %cst_60 : f32 to vector<8x162xf32>
    %84 = arith.subf %83, %80 : vector<8x162xf32>
    %85 = arith.select %82, %80, %84 : vector<8x162xi1>, vector<8x162xf32>
    %cst_61 = arith.constant 1.000000e+00 : f32
    %86 = vector.broadcast %cst_61 : f32 to vector<8x162xf32>
    %87 = arith.addf %86, %85 : vector<8x162xf32>
    %88 = arith.mulf %50, %87 : vector<8x162xf32>
    %cst_62 = arith.constant 0.000000e+00 : f32
    %89 = vector.shape_cast %2 : vector<1x162xi1> to vector<1x162xi1>
    %90 = vector.broadcast %89 : vector<1x162xi1> to vector<8x162xi1>
    %91 = vector.broadcast %cst_62 : f32 to vector<8x162xf32>
    %92 = arith.select %90, %88, %91 : vector<8x162xi1>, vector<8x162xf32>
    %c0_63 = arith.constant 0 : index
    %c0_64 = arith.constant 0 : index
    %93 = vector.load %arg9[%c0_63, %c0_64] : memref<8x256xf32, #tpu.memory_space<vmem>>, vector<8x162xf32>
    tpu.vector_store %arg9[%c0_63, %c0_64], %92 {strides = array<i32>} : memref<8x256xf32, #tpu.memory_space<vmem>>, vector<8x162xf32>,
    %cst_65 = arith.constant 0.000000e+00 : f32
    %94 = vector.broadcast %cst_65 : f32 to vector<16x162xf32>
    %c0_66 = arith.constant 0 : index
    %c0_67 = arith.constant 0 : index
    %95 = vector.load %arg3[%c0_66, %c0_67] : memref<64x8xf32, #tpu.memory_space<vmem>>, vector<16x8xf32>
    %c0_68 = arith.constant 0 : index
    %c0_69 = arith.constant 0 : index
    %96 = vector.load %arg9[%c0_68, %c0_69] : memref<8x256xf32, #tpu.memory_space<vmem>>, vector<8x162xf32>
    %cst_70 = arith.constant dense<0.000000e+00> : vector<16x162xf32>
    %97 = tpu.matmul %95, %96, %cst_70 {dimension_numbers = #tpu.dot_dimension_numbers<[1], [0], [0], [1], [0, 0, 1, 1], [], []>} : vector<16x8xf32>, vector<8x162xf32>, vector<16x162xf32> -> vector<16x162xf32>
    %98 = arith.addf %94, %97 : vector<16x162xf32>
    %c16_71 = arith.constant 16 : index
    %c0_72 = arith.constant 0 : index
    %99 = vector.load %arg3[%c16_71, %c0_72] : memref<64x8xf32, #tpu.memory_space<vmem>>, vector<16x8xf32>
    %c0_73 = arith.constant 0 : index
    %c1_74 = arith.constant 1 : index
    %100 = vector.load %arg9[%c0_73, %c1_74] : memref<8x256xf32, #tpu.memory_space<vmem>>, vector<8x162xf32>
    %cst_75 = arith.constant dense<0.000000e+00> : vector<16x162xf32>
    %101 = tpu.matmul %99, %100, %cst_75 {dimension_numbers = #tpu.dot_dimension_numbers<[1], [0], [0], [1], [0, 0, 1, 1], [], []>} : vector<16x8xf32>, vector<8x162xf32>, vector<16x162xf32> -> vector<16x162xf32>
    %102 = arith.addf %98, %101 : vector<16x162xf32>
    %c32_76 = arith.constant 32 : index
    %c0_77 = arith.constant 0 : index
    %103 = vector.load %arg3[%c32_76, %c0_77] : memref<64x8xf32, #tpu.memory_space<vmem>>, vector<16x8xf32>
    %c0_78 = arith.constant 0 : index
    %c9_79 = arith.constant 9 : index
    %104 = vector.load %arg9[%c0_78, %c9_79] : memref<8x256xf32, #tpu.memory_space<vmem>>, vector<8x162xf32>
    %cst_80 = arith.constant dense<0.000000e+00> : vector<16x162xf32>
    %105 = tpu.matmul %103, %104, %cst_80 {dimension_numbers = #tpu.dot_dimension_numbers<[1], [0], [0], [1], [0, 0, 1, 1], [], []>} : vector<16x8xf32>, vector<8x162xf32>, vector<16x162xf32> -> vector<16x162xf32>
    %106 = arith.addf %102, %105 : vector<16x162xf32>
    %c48_81 = arith.constant 48 : index
    %c0_82 = arith.constant 0 : index
    %107 = vector.load %arg3[%c48_81, %c0_82] : memref<64x8xf32, #tpu.memory_space<vmem>>, vector<16x8xf32>
    %c0_83 = arith.constant 0 : index
    %c10_84 = arith.constant 10 : index
    %108 = vector.load %arg9[%c0_83, %c10_84] : memref<8x256xf32, #tpu.memory_space<vmem>>, vector<8x162xf32>
    %cst_85 = arith.constant dense<0.000000e+00> : vector<16x162xf32>
    %109 = tpu.matmul %107, %108, %cst_85 {dimension_numbers = #tpu.dot_dimension_numbers<[1], [0], [0], [1], [0, 0, 1, 1], [], []>} : vector<16x8xf32>, vector<8x162xf32>, vector<16x162xf32> -> vector<16x162xf32>
    %110 = arith.addf %106, %109 : vector<16x162xf32>
    %c0_86 = arith.constant 0 : index
    %c0_87 = arith.constant 0 : index
    %111 = vector.load %arg4[%c0_86, %c0_87] : memref<16x1xf32, #tpu.memory_space<vmem>>, vector<16x1xf32>
    %112 = vector.broadcast %111 : vector<16x1xf32> to vector<16x162xf32>
    %113 = arith.addf %110, %112 : vector<16x162xf32>
    %cst_88 = arith.constant 0.000000e+00 : f32
    %114 = vector.shape_cast %2 : vector<1x162xi1> to vector<1x162xi1>
    %115 = vector.broadcast %114 : vector<1x162xi1> to vector<16x162xi1>
    %116 = vector.broadcast %cst_88 : f32 to vector<16x162xf32>
    %117 = arith.select %115, %113, %116 : vector<16x162xi1>, vector<16x162xf32>
    %c0_89 = arith.constant 0 : index
    %c0_90 = arith.constant 0 : index
    %118 = vector.load %arg10[%c0_89, %c0_90] : memref<16x256xf32, #tpu.memory_space<vmem>>, vector<16x162xf32>
    tpu.vector_store %arg10[%c0_89, %c0_90], %117 {strides = array<i32>} : memref<16x256xf32, #tpu.memory_space<vmem>>, vector<16x162xf32>,
    %cst_91 = arith.constant 0.000000e+00 : f32
    %119 = vector.broadcast %cst_91 : f32 to vector<16x162xf32>
    %c0_92 = arith.constant 0 : index
    %c0_93 = arith.constant 0 : index
    %120 = vector.load %arg5[%c0_92, %c0_93] : memref<144x4xf32, #tpu.memory_space<vmem>>, vector<16x4xf32>
    %c0_94 = arith.constant 0 : index
    %c0_95 = arith.constant 0 : index
    %121 = vector.load %arg10[%c0_94, %c0_95] : memref<16x256xf32, #tpu.memory_space<vmem>>, vector<4x162xf32>
    %cst_96 = arith.constant dense<0.000000e+00> : vector<16x162xf32>
    %122 = tpu.matmul %120, %121, %cst_96 {dimension_numbers = #tpu.dot_dimension_numbers<[1], [0], [0], [1], [0, 0, 1, 1], [], []>} : vector<16x4xf32>, vector<4x162xf32>, vector<16x162xf32> -> vector<16x162xf32>
    %123 = arith.addf %119, %122 : vector<16x162xf32>
    %c16_97 = arith.constant 16 : index
    %c0_98 = arith.constant 0 : index
    %124 = vector.load %arg5[%c16_97, %c0_98] : memref<144x4xf32, #tpu.memory_space<vmem>>, vector<16x4xf32>
    %c4 = arith.constant 4 : index
    %c0_99 = arith.constant 0 : index
    %125 = vector.load %arg10[%c4, %c0_99] : memref<16x256xf32, #tpu.memory_space<vmem>>, vector<4x162xf32>
    %cst_100 = arith.constant dense<0.000000e+00> : vector<16x162xf32>
    %126 = tpu.matmul %124, %125, %cst_100 {dimension_numbers = #tpu.dot_dimension_numbers<[1], [0], [0], [1], [0, 0, 1, 1], [], []>} : vector<16x4xf32>, vector<4x162xf32>, vector<16x162xf32> -> vector<16x162xf32>
    %127 = arith.addf %123, %126 : vector<16x162xf32>
    %c32_101 = arith.constant 32 : index
    %c0_102 = arith.constant 0 : index
    %128 = vector.load %arg5[%c32_101, %c0_102] : memref<144x4xf32, #tpu.memory_space<vmem>>, vector<16x4xf32>
    %c0_103 = arith.constant 0 : index
    %c1_104 = arith.constant 1 : index
    %129 = vector.load %arg10[%c0_103, %c1_104] : memref<16x256xf32, #tpu.memory_space<vmem>>, vector<4x162xf32>
    %cst_105 = arith.constant dense<0.000000e+00> : vector<16x162xf32>
    %130 = tpu.matmul %128, %129, %cst_105 {dimension_numbers = #tpu.dot_dimension_numbers<[1], [0], [0], [1], [0, 0, 1, 1], [], []>} : vector<16x4xf32>, vector<4x162xf32>, vector<16x162xf32> -> vector<16x162xf32>
    %131 = arith.addf %127, %130 : vector<16x162xf32>
    %c48_106 = arith.constant 48 : index
    %c0_107 = arith.constant 0 : index
    %132 = vector.load %arg5[%c48_106, %c0_107] : memref<144x4xf32, #tpu.memory_space<vmem>>, vector<16x4xf32>
    %c8_108 = arith.constant 8 : index
    %c0_109 = arith.constant 0 : index
    %133 = vector.load %arg10[%c8_108, %c0_109] : memref<16x256xf32, #tpu.memory_space<vmem>>, vector<4x162xf32>
    %cst_110 = arith.constant dense<0.000000e+00> : vector<16x162xf32>
    %134 = tpu.matmul %132, %133, %cst_110 {dimension_numbers = #tpu.dot_dimension_numbers<[1], [0], [0], [1], [0, 0, 1, 1], [], []>} : vector<16x4xf32>, vector<4x162xf32>, vector<16x162xf32> -> vector<16x162xf32>
    %135 = arith.addf %131, %134 : vector<16x162xf32>
    %c64_111 = arith.constant 64 : index
    %c0_112 = arith.constant 0 : index
    %136 = vector.load %arg5[%c64_111, %c0_112] : memref<144x4xf32, #tpu.memory_space<vmem>>, vector<16x4xf32>
    %c12 = arith.constant 12 : index
    %c0_113 = arith.constant 0 : index
    %137 = vector.load %arg10[%c12, %c0_113] : memref<16x256xf32, #tpu.memory_space<vmem>>, vector<4x162xf32>
    %cst_114 = arith.constant dense<0.000000e+00> : vector<16x162xf32>
    %138 = tpu.matmul %136, %137, %cst_114 {dimension_numbers = #tpu.dot_dimension_numbers<[1], [0], [0], [1], [0, 0, 1, 1], [], []>} : vector<16x4xf32>, vector<4x162xf32>, vector<16x162xf32> -> vector<16x162xf32>
    %139 = arith.addf %135, %138 : vector<16x162xf32>
    %c80 = arith.constant 80 : index
    %c0_115 = arith.constant 0 : index
    %140 = vector.load %arg5[%c80, %c0_115] : memref<144x4xf32, #tpu.memory_space<vmem>>, vector<16x4xf32>
    %c8_116 = arith.constant 8 : index
    %c1_117 = arith.constant 1 : index
    %141 = vector.load %arg10[%c8_116, %c1_117] : memref<16x256xf32, #tpu.memory_space<vmem>>, vector<4x162xf32>
    %cst_118 = arith.constant dense<0.000000e+00> : vector<16x162xf32>
    %142 = tpu.matmul %140, %141, %cst_118 {dimension_numbers = #tpu.dot_dimension_numbers<[1], [0], [0], [1], [0, 0, 1, 1], [], []>} : vector<16x4xf32>, vector<4x162xf32>, vector<16x162xf32> -> vector<16x162xf32>
    %143 = arith.addf %139, %142 : vector<16x162xf32>
    %c96 = arith.constant 96 : index
    %c0_119 = arith.constant 0 : index
    %144 = vector.load %arg5[%c96, %c0_119] : memref<144x4xf32, #tpu.memory_space<vmem>>, vector<16x4xf32>
    %c0_120 = arith.constant 0 : index
    %c9_121 = arith.constant 9 : index
    %145 = vector.load %arg10[%c0_120, %c9_121] : memref<16x256xf32, #tpu.memory_space<vmem>>, vector<4x162xf32>
    %cst_122 = arith.constant dense<0.000000e+00> : vector<16x162xf32>
    %146 = tpu.matmul %144, %145, %cst_122 {dimension_numbers = #tpu.dot_dimension_numbers<[1], [0], [0], [1], [0, 0, 1, 1], [], []>} : vector<16x4xf32>, vector<4x162xf32>, vector<16x162xf32> -> vector<16x162xf32>
    %147 = arith.addf %143, %146 : vector<16x162xf32>
    %c112 = arith.constant 112 : index
    %c0_123 = arith.constant 0 : index
    %148 = vector.load %arg5[%c112, %c0_123] : memref<144x4xf32, #tpu.memory_space<vmem>>, vector<16x4xf32>
    %c4_124 = arith.constant 4 : index
    %c9_125 = arith.constant 9 : index
    %149 = vector.load %arg10[%c4_124, %c9_125] : memref<16x256xf32, #tpu.memory_space<vmem>>, vector<4x162xf32>
    %cst_126 = arith.constant dense<0.000000e+00> : vector<16x162xf32>
    %150 = tpu.matmul %148, %149, %cst_126 {dimension_numbers = #tpu.dot_dimension_numbers<[1], [0], [0], [1], [0, 0, 1, 1], [], []>} : vector<16x4xf32>, vector<4x162xf32>, vector<16x162xf32> -> vector<16x162xf32>
    %151 = arith.addf %147, %150 : vector<16x162xf32>
    %c128 = arith.constant 128 : index
    %c0_127 = arith.constant 0 : index
    %152 = vector.load %arg5[%c128, %c0_127] : memref<144x4xf32, #tpu.memory_space<vmem>>, vector<16x4xf32>
    %c0_128 = arith.constant 0 : index
    %c10_129 = arith.constant 10 : index
    %153 = vector.load %arg10[%c0_128, %c10_129] : memref<16x256xf32, #tpu.memory_space<vmem>>, vector<4x162xf32>
    %cst_130 = arith.constant dense<0.000000e+00> : vector<16x162xf32>
    %154 = tpu.matmul %152, %153, %cst_130 {dimension_numbers = #tpu.dot_dimension_numbers<[1], [0], [0], [1], [0, 0, 1, 1], [], []>} : vector<16x4xf32>, vector<4x162xf32>, vector<16x162xf32> -> vector<16x162xf32>
    %155 = arith.addf %151, %154 : vector<16x162xf32>
    %c0_131 = arith.constant 0 : index
    %c0_132 = arith.constant 0 : index
    %156 = vector.load %arg6[%c0_131, %c0_132] : memref<1x1xf32, #tpu.memory_space<vmem>>, vector<1x1xf32>
    %157 = vector.broadcast %156 : vector<1x1xf32> to vector<16x162xf32>
    %158 = arith.addf %155, %157 : vector<16x162xf32>
    %cst_133 = arith.constant 0.000000e+00 : f32
    %159 = vector.shape_cast %2 : vector<1x162xi1> to vector<1x162xi1>
    %160 = vector.broadcast %159 : vector<1x162xi1> to vector<16x162xi1>
    %161 = vector.broadcast %cst_133 : f32 to vector<16x162xf32>
    %162 = arith.select %160, %158, %161 : vector<16x162xi1>, vector<16x162xf32>
    %c0_134 = arith.constant 0 : index
    %c0_135 = arith.constant 0 : index
    %163 = vector.load %arg8[%c0_134, %c0_135] : memref<16x256xf32, #tpu.memory_space<vmem>>, vector<16x162xf32>
    tpu.vector_store %arg8[%c0_134, %c0_135], %162 {strides = array<i32>} : memref<16x256xf32, #tpu.memory_space<vmem>>, vector<16x162xf32>,
    return
  }
}

</mosaic_0001>

<llo_original>
// kernel: model_forward.1
$region0: #{model_forward.1}
  #allocation0 [shape = 'u32[]', space=smem, size = 0x4, offset = 0x4, fixed_abs, tag = 'smem constant byte address 0x4 - core index']
  #allocation1 [shape = 'u32[144,128]{1,0:T(1,128)}', space=vmem, size = 0x12000, scoped, tag = 'internal scratch']
  #allocation2 [shape = 'f32[8,256]{1,0:T(8,128)}', space=vmem, size = 0x2000, scoped, tag = 'scratch operand']
  #allocation3 [shape = 'f32[16,256]{1,0:T(8,128)}', space=vmem, size = 0x4000, scoped, tag = 'scratch operand']
  #allocation4 [shape = 'f32[1,1]{1,0:T(1,128)S(1)}', space=vmem, size = 0x200, scoped, tag = 'scoped memory for model_forward.1']
  %s0 = inlined_call_operand.vmem [shape: f32[32,256], index: 0, kind: input, shape index: {}]
  %s1 = inlined_call_operand.vmem [shape: f32[72,8], index: 1, kind: input, shape index: {}]
  %s2 = inlined_call_operand.vmem [shape: f32[8,1], index: 2, kind: input, shape index: {}]
  %s3 = inlined_call_operand.vmem [shape: f32[64,8], index: 3, kind: input, shape index: {}]
  %s4 = inlined_call_operand.vmem [shape: f32[16,1], index: 4, kind: input, shape index: {}]
  %s5 = inlined_call_operand.vmem [shape: f32[144,4], index: 5, kind: input, shape index: {}]
  %s6 = inlined_call_operand.<no memory space> [shape: f32[1,1], index: 6, kind: input, shape index: {}]
  %s7 = inlined_call_operand.vmem [shape: f32[1,256], index: 7, kind: input, shape index: {}]
  %s8 = inlined_call_operand.vmem [shape: f32[16,256], index: 8, kind: output, shape index: {}]
  %s9 = sld [smem:[#allocation0]]
  $region42: #{model_forward.1} parent=0
    _
  %s11 = ssub.s32 1, %s9
  %s12 = scalar_select 0, %s11, %s9
  %v13 = vstv %s6
  %14 = vst [vmem:[#allocation4] sm:$0x1] %v13
  // Predicated region
  $region2: #{model_forward.1} parent=0 // pred_check
    _
  $region3: #{model_forward.1} parent=0 // pred_check_branch
    %16 = sbr.rel (0) target = $region5
  $region4: #{model_forward.1} parent=0 // pred_region
    _
  $region5: #{model_forward.1} parent=0 // pred_fallthru
    _
  // Predicated region
  $region6: #{model_forward.1} parent=0 // pred_check
    _
  $region7: #{model_forward.1} parent=0 // pred_check_branch
    %18 = sbr.rel (0) target = $region9
  $region8: #{model_forward.1} parent=0 // pred_region
    _
  $region9: #{model_forward.1} parent=0 // pred_fallthru
    _
  // Predicated region
  $region10: #{model_forward.1} parent=0 // pred_check
    _
  $region11: #{model_forward.1} parent=0 // pred_check_branch
    %20 = sbr.rel (0) target = $region13
  $region12: #{model_forward.1} parent=0 // pred_region
    _
  $region13: #{model_forward.1} parent=0 // pred_fallthru
    _
  // Predicated region
  $region14: #{model_forward.1} parent=0 // pred_check
    _
  $region15: #{model_forward.1} parent=0 // pred_check_branch
    %22 = sbr.rel (0) target = $region17
  $region16: #{model_forward.1} parent=0 // pred_region
    _
  $region17: #{model_forward.1} parent=0 // pred_fallthru
    _
  // Predicated region
  $region18: #{model_forward.1} parent=0 // pred_check
    _
  $region19: #{model_forward.1} parent=0 // pred_check_branch
    %24 = sbr.rel (0) target = $region21
  $region20: #{model_forward.1} parent=0 // pred_region
    _
  $region21: #{model_forward.1} parent=0 // pred_fallthru
    _
  // Predicated region
  $region22: #{model_forward.1} parent=0 // pred_check
    _
  $region23: #{model_forward.1} parent=0 // pred_check_branch
    %26 = sbr.rel (0) target = $region25
  $region24: #{model_forward.1} parent=0 // pred_region
    _
  $region25: #{model_forward.1} parent=0 // pred_fallthru
    _
  // Predicated region
  $region26: #{model_forward.1} parent=0 // pred_check
    _
  $region27: #{model_forward.1} parent=0 // pred_check_branch
    %28 = sbr.rel (0) target = $region29
  $region28: #{model_forward.1} parent=0 // pred_region
    _
  $region29: #{model_forward.1} parent=0 // pred_fallthru
    _
  // Predicated region
  $region30: #{model_forward.1} parent=0 // pred_check
    _
  $region31: #{model_forward.1} parent=0 // pred_check_branch
    %30 = sbr.rel (0) target = $region33
  $region32: #{model_forward.1} parent=0 // pred_region
    _
  $region33: #{model_forward.1} parent=0 // pred_fallthru
    _
  %v31 = vld [vmem:[%s7] sm:$0x3]
  %vm32 = vcmp.gt.f32.partialorder %v31, 0.5
  %33 = vst [vmem:[#allocation2] sm:$0xff] 0.0
  %34 = vst [vmem:[#allocation2 + $0x8] sm:$0xff] 0.0
  %35 = vst [vmem:[#allocation3] sm:$0xff] 0.0
  %36 = vst [vmem:[#allocation3 + $0x8] sm:$0xff] 0.0
  %37 = vst [vmem:[#allocation3 + $0x10] sm:$0xff] 0.0
  %38 = vst [vmem:[#allocation3 + $0x18] sm:$0xff] 0.0
  %39 = vst [vmem:[%s8] sm:$0xff] 0.0
  %40 = vst [vmem:[%s8 + $0x8] sm:$0xff] 0.0
  %41 = vst [vmem:[%s8 + $0x10] sm:$0xff] 0.0
  %42 = vst [vmem:[%s8 + $0x18] sm:$0xff] 0.0
  %v43 = vld [vmem:[%s1] sm:$0xff]
  %v44 = vld [vmem:[%s0] sm:$0xff]
  %v45 = vld [vmem:[%s0 + $0x8] sm:$0xff]
  %v46 = vld [vmem:[%s1 + $0x8] sm:$0xff]
  %v47 = vld [vmem:[%s0 + $0x10] sm:$0xff]
  %v48 = vld [vmem:[%s0 + $0x18] sm:$0xff]
  %vm49 = vcmask 64512
  %v51 = vsel %vm49, %v46, 0
  %53 = vmatprep.subr.mxu0 0.0
  %54 = vmatpush1.msra.mxu0 0.0
  %55 = vmatprep.subr.mxu0 0.0
  %56 = vmatpush1.msra.mxu0 0.0
  %57 = vmatprep.subr.mxu0 0.0
  %58 = vmatpush1.msra.mxu0 0.0
  %59 = vmatprep.subr.mxu0 0.0
  %60 = vmatpush1.msra.mxu0 0.0
  %61 = vmatprep.subr.mxu0 0.0
  %62 = vmatpush1.msra.mxu0 0.0
  %63 = vmatprep.subr.mxu0 0.0
  %64 = vmatpush1.msra.mxu0 0.0
  %65 = vmatprep.subr.mxu0 0.0
  %66 = vmatpush1.msra.mxu0 0.0
  %67 = vmatprep.subr.mxu0 0.0
  %68 = vmatpush1.msra.mxu0 0.0
  %69 = vmatprep.subr.mxu0 0.0
  %70 = vmatpush1.msra.mxu0 0.0
  %71 = vmatprep.subr.mxu0 0.0
  %72 = vmatpush1.msra.mxu0 0.0
  %73 = vmatprep.subr.mxu0 0.0
  %74 = vmatpush1.msra.mxu0 0.0
  %75 = vmatprep.subr.mxu0 0.0
  %76 = vmatpush1.msra.mxu0 0.0
  %77 = vmatprep.subr.mxu0 0.0
  %78 = vmatpush1.msra.mxu0 0.0
  %79 = vmatprep.subr.mxu0 0.0
  %80 = vmatpush1.msra.mxu0 0.0
  %81 = vmatprep.subr.mxu0 0.0
  %82 = vmatpush1.msra.mxu0 0.0
  %83 = vmatprep.subr.mxu0 %v48
  %84 = vmatpush1.msra.mxu0 %v47
  %85 = vmatprep.subr.mxu0 0.0
  %86 = vmatpush2.msra.mxu0 0.0
  %87 = vmatprep.subr.mxu0 0.0
  %88 = vmatpush2.msra.mxu0 0.0
  %89 = vmatprep.subr.mxu0 0.0
  %90 = vmatpush2.msra.mxu0 0.0
  %91 = vmatprep.subr.mxu0 0.0
  %92 = vmatpush2.msra.mxu0 0.0
  %93 = vmatprep.subr.mxu0 0.0
  %94 = vmatpush2.msra.mxu0 0.0
  %95 = vmatprep.subr.mxu0 0.0
  %96 = vmatpush2.msra.mxu0 0.0
  %97 = vmatprep.subr.mxu0 0.0
  %98 = vmatpush2.msra.mxu0 0.0
  %99 = vmatprep.subr.mxu0 0.0
  %100 = vmatpush2.msra.mxu0 0.0
  %101 = vmatprep.subr.mxu0 0.0
  %102 = vmatpush2.msra.mxu0 0.0
  %103 = vmatprep.subr.mxu0 0.0
  %104 = vmatpush2.msra.mxu0 0.0
  %105 = vmatprep.subr.mxu0 0.0
  %106 = vmatpush2.msra.mxu0 0.0
  %107 = vmatprep.subr.mxu0 0.0
  %108 = vmatpush2.msra.mxu0 0.0
  %109 = vmatprep.subr.mxu0 0.0
  %110 = vmatpush2.msra.mxu0 0.0
  %111 = vmatprep.subr.mxu0 0.0
  %112 = vmatpush2.msra.mxu0 0.0
  %113 = vmatprep.subr.mxu0 0.0
  %114 = vmatpush2.msra.mxu0 0.0
  %115 = vmatprep.subr.mxu0 0.0
  %116 = vmatpush2.msra.mxu0 0.0
  %117 = vmatprep.mubr.f32.mxu0 0.0
  %118 = vmatmul.mubr.f32.gmra.mxu0 %v51
  %v119 = vpop.f32.mrf.mxu0
  %v120 = vadd.f32 0.0, %v119
  %v121 = vpop.f32.mrf.mxu0
  %v122 = vadd.f32 0.0, %v121
  %123 = vdwg.mxu0
  %v125 = vsel %vm49, %v43, 0
  %127 = vmatprep.subr.mxu0 0.0
  %128 = vmatpush1.msra.mxu0 0.0
  %129 = vmatprep.subr.mxu0 0.0
  %130 = vmatpush1.msra.mxu0 0.0
  %131 = vmatprep.subr.mxu0 0.0
  %132 = vmatpush1.msra.mxu0 0.0
  %133 = vmatprep.subr.mxu0 0.0
  %134 = vmatpush1.msra.mxu0 0.0
  %135 = vmatprep.subr.mxu0 0.0
  %136 = vmatpush1.msra.mxu0 0.0
  %137 = vmatprep.subr.mxu0 0.0
  %138 = vmatpush1.msra.mxu0 0.0
  %139 = vmatprep.subr.mxu0 0.0
  %140 = vmatpush1.msra.mxu0 0.0
  %141 = vmatprep.subr.mxu0 0.0
  %142 = vmatpush1.msra.mxu0 0.0
  %143 = vmatprep.subr.mxu0 0.0
  %144 = vmatpush1.msra.mxu0 0.0
  %145 = vmatprep.subr.mxu0 0.0
  %146 = vmatpush1.msra.mxu0 0.0
  %147 = vmatprep.subr.mxu0 0.0
  %148 = vmatpush1.msra.mxu0 0.0
  %149 = vmatprep.subr.mxu0 0.0
  %150 = vmatpush1.msra.mxu0 0.0
  %151 = vmatprep.subr.mxu0 0.0
  %152 = vmatpush1.msra.mxu0 0.0
  %153 = vmatprep.subr.mxu0 0.0
  %154 = vmatpush1.msra.mxu0 0.0
  %155 = vmatprep.subr.mxu0 0.0
  %156 = vmatpush1.msra.mxu0 0.0
  %157 = vmatprep.subr.mxu0 %v45
  %158 = vmatpush1.msra.mxu0 %v44
  %159 = vmatprep.subr.mxu0 0.0
  %160 = vmatpush2.msra.mxu0 0.0
  %161 = vmatprep.subr.mxu0 0.0
  %162 = vmatpush2.msra.mxu0 0.0
  %163 = vmatprep.subr.mxu0 0.0
  %164 = vmatpush2.msra.mxu0 0.0
  %165 = vmatprep.subr.mxu0 0.0
  %166 = vmatpush2.msra.mxu0 0.0
  %167 = vmatprep.subr.mxu0 0.0
  %168 = vmatpush2.msra.mxu0 0.0
  %169 = vmatprep.subr.mxu0 0.0
  %170 = vmatpush2.msra.mxu0 0.0
  %171 = vmatprep.subr.mxu0 0.0
  %172 = vmatpush2.msra.mxu0 0.0
  %173 = vmatprep.subr.mxu0 0.0
  %174 = vmatpush2.msra.mxu0 0.0
  %175 = vmatprep.subr.mxu0 0.0
  %176 = vmatpush2.msra.mxu0 0.0
  %177 = vmatprep.subr.mxu0 0.0
  %178 = vmatpush2.msra.mxu0 0.0
  %179 = vmatprep.subr.mxu0 0.0
  %180 = vmatpush2.msra.mxu0 0.0
  %181 = vmatprep.subr.mxu0 0.0
  %182 = vmatpush2.msra.mxu0 0.0
  %183 = vmatprep.subr.mxu0 0.0
  %184 = vmatpush2.msra.mxu0 0.0
  %185 = vmatprep.subr.mxu0 0.0
  %186 = vmatpush2.msra.mxu0 0.0
  %187 = vmatprep.subr.mxu0 0.0
  %188 = vmatpush2.msra.mxu0 0.0
  %189 = vmatprep.subr.mxu0 0.0
  %190 = vmatpush2.msra.mxu0 0.0
  %191 = vmatprep.mubr.f32.mxu0 0.0
  %192 = vmatmul.mubr.f32.gmra.mxu0 %v125
  %v193 = vpop.f32.mrf.mxu0
  %v194 = vadd.f32 %v120, %v193
  %v195 = vpop.f32.mrf.mxu0
  %v196 = vadd.f32 %v122, %v195
  %197 = vdwg.mxu0
  %v198 = vld [vmem:[%s1 + $0x10] sm:$0xff]
  %201 = vrot.lane.b32.xlu0 %v44, 127
  %v202 = vpop.permute.xlu0 %201
  %203 = vrot.lane.b32.xlu0 %v45, 127
  %v204 = vpop.permute.xlu0 %203
  %vm205 = vcmask 1039360
  %v206 = vsel %vm205, %v202, %v204
  %v210 = vsel %vm49, %v198, 0
  %212 = vmatprep.subr.mxu0 0.0
  %213 = vmatpush1.msra.mxu0 0.0
  %214 = vmatprep.subr.mxu0 0.0
  %215 = vmatpush1.msra.mxu0 0.0
  %216 = vmatprep.subr.mxu0 0.0
  %217 = vmatpush1.msra.mxu0 0.0
  %218 = vmatprep.subr.mxu0 0.0
  %219 = vmatpush1.msra.mxu0 0.0
  %220 = vmatprep.subr.mxu0 0.0
  %221 = vmatpush1.msra.mxu0 0.0
  %222 = vmatprep.subr.mxu0 0.0
  %223 = vmatpush1.msra.mxu0 0.0
  %224 = vmatprep.subr.mxu0 0.0
  %225 = vmatpush1.msra.mxu0 0.0
  %226 = vmatprep.subr.mxu0 0.0
  %227 = vmatpush1.msra.mxu0 0.0
  %228 = vmatprep.subr.mxu0 0.0
  %229 = vmatpush1.msra.mxu0 0.0
  %230 = vmatprep.subr.mxu0 0.0
  %231 = vmatpush1.msra.mxu0 0.0
  %232 = vmatprep.subr.mxu0 0.0
  %233 = vmatpush1.msra.mxu0 0.0
  %234 = vmatprep.subr.mxu0 0.0
  %235 = vmatpush1.msra.mxu0 0.0
  %236 = vmatprep.subr.mxu0 0.0
  %237 = vmatpush1.msra.mxu0 0.0
  %238 = vmatprep.subr.mxu0 0.0
  %239 = vmatpush1.msra.mxu0 0.0
  %240 = vmatprep.subr.mxu0 0.0
  %241 = vmatpush1.msra.mxu0 0.0
  %242 = vmatprep.subr.mxu0 %v204
  %243 = vmatpush1.msra.mxu0 %v206
  %244 = vmatprep.subr.mxu0 0.0
  %245 = vmatpush2.msra.mxu0 0.0
  %246 = vmatprep.subr.mxu0 0.0
  %247 = vmatpush2.msra.mxu0 0.0
  %248 = vmatprep.subr.mxu0 0.0
  %249 = vmatpush2.msra.mxu0 0.0
  %250 = vmatprep.subr.mxu0 0.0
  %251 = vmatpush2.msra.mxu0 0.0
  %252 = vmatprep.subr.mxu0 0.0
  %253 = vmatpush2.msra.mxu0 0.0
  %254 = vmatprep.subr.mxu0 0.0
  %255 = vmatpush2.msra.mxu0 0.0
  %256 = vmatprep.subr.mxu0 0.0
  %257 = vmatpush2.msra.mxu0 0.0
  %258 = vmatprep.subr.mxu0 0.0
  %259 = vmatpush2.msra.mxu0 0.0
  %260 = vmatprep.subr.mxu0 0.0
  %261 = vmatpush2.msra.mxu0 0.0
  %262 = vmatprep.subr.mxu0 0.0
  %263 = vmatpush2.msra.mxu0 0.0
  %264 = vmatprep.subr.mxu0 0.0
  %265 = vmatpush2.msra.mxu0 0.0
  %266 = vmatprep.subr.mxu0 0.0
  %267 = vmatpush2.msra.mxu0 0.0
  %268 = vmatprep.subr.mxu0 0.0
  %269 = vmatpush2.msra.mxu0 0.0
  %270 = vmatprep.subr.mxu0 0.0
  %271 = vmatpush2.msra.mxu0 0.0
  %272 = vmatprep.subr.mxu0 0.0
  %273 = vmatpush2.msra.mxu0 0.0
  %274 = vmatprep.subr.mxu0 0.0
  %275 = vmatpush2.msra.mxu0 0.0
  %276 = vmatprep.mubr.f32.mxu0 0.0
  %277 = vmatmul.mubr.f32.gmra.mxu0 %v210
  %v278 = vpop.f32.mrf.mxu0
  %v279 = vadd.f32 0.0, %v278
  %v280 = vpop.f32.mrf.mxu0
  %v281 = vadd.f32 0.0, %v280
  %282 = vdwg.mxu0
  %v283 = vadd.f32 %v194, %v279
  %v284 = vadd.f32 %v196, %v281
  %v285 = vld [vmem:[%s1 + $0x18] sm:$0xff]
  %v286 = vld [vmem:[%s0 + $0x20] sm:$0xff]
  %v287 = vld [vmem:[%s0 + $0x28] sm:$0xff]
  %v289 = vsel %vm49, %v285, 0
  %291 = vmatprep.subr.mxu0 0.0
  %292 = vmatpush1.msra.mxu0 0.0
  %293 = vmatprep.subr.mxu0 0.0
  %294 = vmatpush1.msra.mxu0 0.0
  %295 = vmatprep.subr.mxu0 0.0
  %296 = vmatpush1.msra.mxu0 0.0
  %297 = vmatprep.subr.mxu0 0.0
  %298 = vmatpush1.msra.mxu0 0.0
  %299 = vmatprep.subr.mxu0 0.0
  %300 = vmatpush1.msra.mxu0 0.0
  %301 = vmatprep.subr.mxu0 0.0
  %302 = vmatpush1.msra.mxu0 0.0
  %303 = vmatprep.subr.mxu0 0.0
  %304 = vmatpush1.msra.mxu0 0.0
  %305 = vmatprep.subr.mxu0 0.0
  %306 = vmatpush1.msra.mxu0 0.0
  %307 = vmatprep.subr.mxu0 0.0
  %308 = vmatpush1.msra.mxu0 0.0
  %309 = vmatprep.subr.mxu0 0.0
  %310 = vmatpush1.msra.mxu0 0.0
  %311 = vmatprep.subr.mxu0 0.0
  %312 = vmatpush1.msra.mxu0 0.0
  %313 = vmatprep.subr.mxu0 0.0
  %314 = vmatpush1.msra.mxu0 0.0
  %315 = vmatprep.subr.mxu0 0.0
  %316 = vmatpush1.msra.mxu0 0.0
  %317 = vmatprep.subr.mxu0 0.0
  %318 = vmatpush1.msra.mxu0 0.0
  %319 = vmatprep.subr.mxu0 0.0
  %320 = vmatpush1.msra.mxu0 0.0
  %321 = vmatprep.subr.mxu0 %v287
  %322 = vmatpush1.msra.mxu0 %v286
  %323 = vmatprep.subr.mxu0 0.0
  %324 = vmatpush2.msra.mxu0 0.0
  %325 = vmatprep.subr.mxu0 0.0
  %326 = vmatpush2.msra.mxu0 0.0
  %327 = vmatprep.subr.mxu0 0.0
  %328 = vmatpush2.msra.mxu0 0.0
  %329 = vmatprep.subr.mxu0 0.0
  %330 = vmatpush2.msra.mxu0 0.0
  %331 = vmatprep.subr.mxu0 0.0
  %332 = vmatpush2.msra.mxu0 0.0
  %333 = vmatprep.subr.mxu0 0.0
  %334 = vmatpush2.msra.mxu0 0.0
  %335 = vmatprep.subr.mxu0 0.0
  %336 = vmatpush2.msra.mxu0 0.0
  %337 = vmatprep.subr.mxu0 0.0
  %338 = vmatpush2.msra.mxu0 0.0
  %339 = vmatprep.subr.mxu0 0.0
  %340 = vmatpush2.msra.mxu0 0.0
  %341 = vmatprep.subr.mxu0 0.0
  %342 = vmatpush2.msra.mxu0 0.0
  %343 = vmatprep.subr.mxu0 0.0
  %344 = vmatpush2.msra.mxu0 0.0
  %345 = vmatprep.subr.mxu0 0.0
  %346 = vmatpush2.msra.mxu0 0.0
  %347 = vmatprep.subr.mxu0 0.0
  %348 = vmatpush2.msra.mxu0 0.0
  %349 = vmatprep.subr.mxu0 0.0
  %350 = vmatpush2.msra.mxu0 0.0
  %351 = vmatprep.subr.mxu0 0.0
  %352 = vmatpush2.msra.mxu0 0.0
  %353 = vmatprep.subr.mxu0 0.0
  %354 = vmatpush2.msra.mxu0 0.0
  %355 = vmatprep.mubr.f32.mxu0 0.0
  %356 = vmatmul.mubr.f32.gmra.mxu0 %v289
  %v357 = vpop.f32.mrf.mxu0
  %v358 = vadd.f32 0.0, %v357
  %v359 = vpop.f32.mrf.mxu0
  %v360 = vadd.f32 0.0, %v359
  %361 = vdwg.mxu0
  %v362 = vadd.f32 %v283, %v358
  %v363 = vadd.f32 %v284, %v360
  %v364 = vld [vmem:[%s1 + $0x20] sm:$0xff]
  %v365 = vld [vmem:[%s0 + $0x30] sm:$0xff]
  %v366 = vld [vmem:[%s0 + $0x38] sm:$0xff]
  %v368 = vsel %vm49, %v364, 0
  %370 = vmatprep.subr.mxu0 0.0
  %371 = vmatpush1.msra.mxu0 0.0
  %372 = vmatprep.subr.mxu0 0.0
  %373 = vmatpush1.msra.mxu0 0.0
  %374 = vmatprep.subr.mxu0 0.0
  %375 = vmatpush1.msra.mxu0 0.0
  %376 = vmatprep.subr.mxu0 0.0
  %377 = vmatpush1.msra.mxu0 0.0
  %378 = vmatprep.subr.mxu0 0.0
  %379 = vmatpush1.msra.mxu0 0.0
  %380 = vmatprep.subr.mxu0 0.0
  %381 = vmatpush1.msra.mxu0 0.0
  %382 = vmatprep.subr.mxu0 0.0
  %383 = vmatpush1.msra.mxu0 0.0
  %384 = vmatprep.subr.mxu0 0.0
  %385 = vmatpush1.msra.mxu0 0.0
  %386 = vmatprep.subr.mxu0 0.0
  %387 = vmatpush1.msra.mxu0 0.0
  %388 = vmatprep.subr.mxu0 0.0
  %389 = vmatpush1.msra.mxu0 0.0
  %390 = vmatprep.subr.mxu0 0.0
  %391 = vmatpush1.msra.mxu0 0.0
  %392 = vmatprep.subr.mxu0 0.0
  %393 = vmatpush1.msra.mxu0 0.0
  %394 = vmatprep.subr.mxu0 0.0
  %395 = vmatpush1.msra.mxu0 0.0
  %396 = vmatprep.subr.mxu0 0.0
  %397 = vmatpush1.msra.mxu0 0.0
  %398 = vmatprep.subr.mxu0 0.0
  %399 = vmatpush1.msra.mxu0 0.0
  %400 = vmatprep.subr.mxu0 %v366
  %401 = vmatpush1.msra.mxu0 %v365
  %402 = vmatprep.subr.mxu0 0.0
  %403 = vmatpush2.msra.mxu0 0.0
  %404 = vmatprep.subr.mxu0 0.0
  %405 = vmatpush2.msra.mxu0 0.0
  %406 = vmatprep.subr.mxu0 0.0
  %407 = vmatpush2.msra.mxu0 0.0
  %408 = vmatprep.subr.mxu0 0.0
  %409 = vmatpush2.msra.mxu0 0.0
  %410 = vmatprep.subr.mxu0 0.0
  %411 = vmatpush2.msra.mxu0 0.0
  %412 = vmatprep.subr.mxu0 0.0
  %413 = vmatpush2.msra.mxu0 0.0
  %414 = vmatprep.subr.mxu0 0.0
  %415 = vmatpush2.msra.mxu0 0.0
  %416 = vmatprep.subr.mxu0 0.0
  %417 = vmatpush2.msra.mxu0 0.0
  %418 = vmatprep.subr.mxu0 0.0
  %419 = vmatpush2.msra.mxu0 0.0
  %420 = vmatprep.subr.mxu0 0.0
  %421 = vmatpush2.msra.mxu0 0.0
  %422 = vmatprep.subr.mxu0 0.0
  %423 = vmatpush2.msra.mxu0 0.0
  %424 = vmatprep.subr.mxu0 0.0
  %425 = vmatpush2.msra.mxu0 0.0
  %426 = vmatprep.subr.mxu0 0.0
  %427 = vmatpush2.msra.mxu0 0.0
  %428 = vmatprep.subr.mxu0 0.0
  %429 = vmatpush2.msra.mxu0 0.0
  %430 = vmatprep.subr.mxu0 0.0
  %431 = vmatpush2.msra.mxu0 0.0
  %432 = vmatprep.subr.mxu0 0.0
  %433 = vmatpush2.msra.mxu0 0.0
  %434 = vmatprep.mubr.f32.mxu0 0.0
  %435 = vmatmul.mubr.f32.gmra.mxu0 %v368
  %v436 = vpop.f32.mrf.mxu0
  %v437 = vadd.f32 0.0, %v436
  %v438 = vpop.f32.mrf.mxu0
  %v439 = vadd.f32 0.0, %v438
  %440 = vdwg.mxu0
  %v441 = vadd.f32 %v362, %v437
  %v442 = vadd.f32 %v363, %v439
  %v443 = vld [vmem:[%s1 + $0x28] sm:$0xff]
  %446 = vrot.lane.b32.xlu0 %v286, 127
  %v447 = vpop.permute.xlu0 %446
  %448 = vrot.lane.b32.xlu0 %v287, 127
  %v449 = vpop.permute.xlu0 %448
  %v450 = vsel %vm205, %v447, %v449
  %v454 = vsel %vm49, %v443, 0
  %456 = vmatprep.subr.mxu0 0.0
  %457 = vmatpush1.msra.mxu0 0.0
  %458 = vmatprep.subr.mxu0 0.0
  %459 = vmatpush1.msra.mxu0 0.0
  %460 = vmatprep.subr.mxu0 0.0
  %461 = vmatpush1.msra.mxu0 0.0
  %462 = vmatprep.subr.mxu0 0.0
  %463 = vmatpush1.msra.mxu0 0.0
  %464 = vmatprep.subr.mxu0 0.0
  %465 = vmatpush1.msra.mxu0 0.0
  %466 = vmatprep.subr.mxu0 0.0
  %467 = vmatpush1.msra.mxu0 0.0
  %468 = vmatprep.subr.mxu0 0.0
  %469 = vmatpush1.msra.mxu0 0.0
  %470 = vmatprep.subr.mxu0 0.0
  %471 = vmatpush1.msra.mxu0 0.0
  %472 = vmatprep.subr.mxu0 0.0
  %473 = vmatpush1.msra.mxu0 0.0
  %474 = vmatprep.subr.mxu0 0.0
  %475 = vmatpush1.msra.mxu0 0.0
  %476 = vmatprep.subr.mxu0 0.0
  %477 = vmatpush1.msra.mxu0 0.0
  %478 = vmatprep.subr.mxu0 0.0
  %479 = vmatpush1.msra.mxu0 0.0
  %480 = vmatprep.subr.mxu0 0.0
  %481 = vmatpush1.msra.mxu0 0.0
  %482 = vmatprep.subr.mxu0 0.0
  %483 = vmatpush1.msra.mxu0 0.0
  %484 = vmatprep.subr.mxu0 0.0
  %485 = vmatpush1.msra.mxu0 0.0
  %486 = vmatprep.subr.mxu0 %v449
  %487 = vmatpush1.msra.mxu0 %v450
  %488 = vmatprep.subr.mxu0 0.0
  %489 = vmatpush2.msra.mxu0 0.0
  %490 = vmatprep.subr.mxu0 0.0
  %491 = vmatpush2.msra.mxu0 0.0
  %492 = vmatprep.subr.mxu0 0.0
  %493 = vmatpush2.msra.mxu0 0.0
  %494 = vmatprep.subr.mxu0 0.0
  %495 = vmatpush2.msra.mxu0 0.0
  %496 = vmatprep.subr.mxu0 0.0
  %497 = vmatpush2.msra.mxu0 0.0
  %498 = vmatprep.subr.mxu0 0.0
  %499 = vmatpush2.msra.mxu0 0.0
  %500 = vmatprep.subr.mxu0 0.0
  %501 = vmatpush2.msra.mxu0 0.0
  %502 = vmatprep.subr.mxu0 0.0
  %503 = vmatpush2.msra.mxu0 0.0
  %504 = vmatprep.subr.mxu0 0.0
  %505 = vmatpush2.msra.mxu0 0.0
  %506 = vmatprep.subr.mxu0 0.0
  %507 = vmatpush2.msra.mxu0 0.0
  %508 = vmatprep.subr.mxu0 0.0
  %509 = vmatpush2.msra.mxu0 0.0
  %510 = vmatprep.subr.mxu0 0.0
  %511 = vmatpush2.msra.mxu0 0.0
  %512 = vmatprep.subr.mxu0 0.0
  %513 = vmatpush2.msra.mxu0 0.0
  %514 = vmatprep.subr.mxu0 0.0
  %515 = vmatpush2.msra.mxu0 0.0
  %516 = vmatprep.subr.mxu0 0.0
  %517 = vmatpush2.msra.mxu0 0.0
  %518 = vmatprep.subr.mxu0 0.0
  %519 = vmatpush2.msra.mxu0 0.0
  %520 = vmatprep.mubr.f32.mxu0 0.0
  %521 = vmatmul.mubr.f32.gmra.mxu0 %v454
  %v522 = vpop.f32.mrf.mxu0
  %v523 = vadd.f32 0.0, %v522
  %v524 = vpop.f32.mrf.mxu0
  %v525 = vadd.f32 0.0, %v524
  %526 = vdwg.mxu0
  %v527 = vadd.f32 %v441, %v523
  %v528 = vadd.f32 %v442, %v525
  %v529 = vld [vmem:[%s1 + $0x30] sm:$0xff]
  %530 = vrot.lane.b32.xlu0 %v44, 119
  %v531 = vpop.permute.xlu0 %530
  %532 = vrot.lane.b32.xlu0 %v45, 119
  %v533 = vpop.permute.xlu0 %532
  %vm534 = vcmask 973824
  %v535 = vsel %vm534, %v531, %v533
  %v539 = vsel %vm49, %v529, 0
  %541 = vmatprep.subr.mxu0 0.0
  %542 = vmatpush1.msra.mxu0 0.0
  %543 = vmatprep.subr.mxu0 0.0
  %544 = vmatpush1.msra.mxu0 0.0
  %545 = vmatprep.subr.mxu0 0.0
  %546 = vmatpush1.msra.mxu0 0.0
  %547 = vmatprep.subr.mxu0 0.0
  %548 = vmatpush1.msra.mxu0 0.0
  %549 = vmatprep.subr.mxu0 0.0
  %550 = vmatpush1.msra.mxu0 0.0
  %551 = vmatprep.subr.mxu0 0.0
  %552 = vmatpush1.msra.mxu0 0.0
  %553 = vmatprep.subr.mxu0 0.0
  %554 = vmatpush1.msra.mxu0 0.0
  %555 = vmatprep.subr.mxu0 0.0
  %556 = vmatpush1.msra.mxu0 0.0
  %557 = vmatprep.subr.mxu0 0.0
  %558 = vmatpush1.msra.mxu0 0.0
  %559 = vmatprep.subr.mxu0 0.0
  %560 = vmatpush1.msra.mxu0 0.0
  %561 = vmatprep.subr.mxu0 0.0
  %562 = vmatpush1.msra.mxu0 0.0
  %563 = vmatprep.subr.mxu0 0.0
  %564 = vmatpush1.msra.mxu0 0.0
  %565 = vmatprep.subr.mxu0 0.0
  %566 = vmatpush1.msra.mxu0 0.0
  %567 = vmatprep.subr.mxu0 0.0
  %568 = vmatpush1.msra.mxu0 0.0
  %569 = vmatprep.subr.mxu0 0.0
  %570 = vmatpush1.msra.mxu0 0.0
  %571 = vmatprep.subr.mxu0 %v533
  %572 = vmatpush1.msra.mxu0 %v535
  %573 = vmatprep.subr.mxu0 0.0
  %574 = vmatpush2.msra.mxu0 0.0
  %575 = vmatprep.subr.mxu0 0.0
  %576 = vmatpush2.msra.mxu0 0.0
  %577 = vmatprep.subr.mxu0 0.0
  %578 = vmatpush2.msra.mxu0 0.0
  %579 = vmatprep.subr.mxu0 0.0
  %580 = vmatpush2.msra.mxu0 0.0
  %581 = vmatprep.subr.mxu0 0.0
  %582 = vmatpush2.msra.mxu0 0.0
  %583 = vmatprep.subr.mxu0 0.0
  %584 = vmatpush2.msra.mxu0 0.0
  %585 = vmatprep.subr.mxu0 0.0
  %586 = vmatpush2.msra.mxu0 0.0
  %587 = vmatprep.subr.mxu0 0.0
  %588 = vmatpush2.msra.mxu0 0.0
  %589 = vmatprep.subr.mxu0 0.0
  %590 = vmatpush2.msra.mxu0 0.0
  %591 = vmatprep.subr.mxu0 0.0
  %592 = vmatpush2.msra.mxu0 0.0
  %593 = vmatprep.subr.mxu0 0.0
  %594 = vmatpush2.msra.mxu0 0.0
  %595 = vmatprep.subr.mxu0 0.0
  %596 = vmatpush2.msra.mxu0 0.0
  %597 = vmatprep.subr.mxu0 0.0
  %598 = vmatpush2.msra.mxu0 0.0
  %599 = vmatprep.subr.mxu0 0.0
  %600 = vmatpush2.msra.mxu0 0.0
  %601 = vmatprep.subr.mxu0 0.0
  %602 = vmatpush2.msra.mxu0 0.0
  %603 = vmatprep.subr.mxu0 0.0
  %604 = vmatpush2.msra.mxu0 0.0
  %605 = vmatprep.mubr.f32.mxu0 0.0
  %606 = vmatmul.mubr.f32.gmra.mxu0 %v539
  %v607 = vpop.f32.mrf.mxu0
  %v608 = vadd.f32 0.0, %v607
  %v609 = vpop.f32.mrf.mxu0
  %v610 = vadd.f32 0.0, %v609
  %611 = vdwg.mxu0
  %v612 = vadd.f32 %v527, %v608
  %v613 = vadd.f32 %v528, %v610
  %v614 = vld [vmem:[%s1 + $0x38] sm:$0xff]
  %617 = vrot.lane.b32.xlu0 %v47, 119
  %v618 = vpop.permute.xlu0 %617
  %619 = vrot.lane.b32.xlu0 %v48, 119
  %v620 = vpop.permute.xlu0 %619
  %v621 = vsel %vm534, %v618, %v620
  %v625 = vsel %vm49, %v614, 0
  %627 = vmatprep.subr.mxu0 0.0
  %628 = vmatpush1.msra.mxu0 0.0
  %629 = vmatprep.subr.mxu0 0.0
  %630 = vmatpush1.msra.mxu0 0.0
  %631 = vmatprep.subr.mxu0 0.0
  %632 = vmatpush1.msra.mxu0 0.0
  %633 = vmatprep.subr.mxu0 0.0
  %634 = vmatpush1.msra.mxu0 0.0
  %635 = vmatprep.subr.mxu0 0.0
  %636 = vmatpush1.msra.mxu0 0.0
  %637 = vmatprep.subr.mxu0 0.0
  %638 = vmatpush1.msra.mxu0 0.0
  %639 = vmatprep.subr.mxu0 0.0
  %640 = vmatpush1.msra.mxu0 0.0
  %641 = vmatprep.subr.mxu0 0.0
  %642 = vmatpush1.msra.mxu0 0.0
  %643 = vmatprep.subr.mxu0 0.0
  %644 = vmatpush1.msra.mxu0 0.0
  %645 = vmatprep.subr.mxu0 0.0
  %646 = vmatpush1.msra.mxu0 0.0
  %647 = vmatprep.subr.mxu0 0.0
  %648 = vmatpush1.msra.mxu0 0.0
  %649 = vmatprep.subr.mxu0 0.0
  %650 = vmatpush1.msra.mxu0 0.0
  %651 = vmatprep.subr.mxu0 0.0
  %652 = vmatpush1.msra.mxu0 0.0
  %653 = vmatprep.subr.mxu0 0.0
  %654 = vmatpush1.msra.mxu0 0.0
  %655 = vmatprep.subr.mxu0 0.0
  %656 = vmatpush1.msra.mxu0 0.0
  %657 = vmatprep.subr.mxu0 %v620
  %658 = vmatpush1.msra.mxu0 %v621
  %659 = vmatprep.subr.mxu0 0.0
  %660 = vmatpush2.msra.mxu0 0.0
  %661 = vmatprep.subr.mxu0 0.0
  %662 = vmatpush2.msra.mxu0 0.0
  %663 = vmatprep.subr.mxu0 0.0
  %664 = vmatpush2.msra.mxu0 0.0
  %665 = vmatprep.subr.mxu0 0.0
  %666 = vmatpush2.msra.mxu0 0.0
  %667 = vmatprep.subr.mxu0 0.0
  %668 = vmatpush2.msra.mxu0 0.0
  %669 = vmatprep.subr.mxu0 0.0
  %670 = vmatpush2.msra.mxu0 0.0
  %671 = vmatprep.subr.mxu0 0.0
  %672 = vmatpush2.msra.mxu0 0.0
  %673 = vmatprep.subr.mxu0 0.0
  %674 = vmatpush2.msra.mxu0 0.0
  %675 = vmatprep.subr.mxu0 0.0
  %676 = vmatpush2.msra.mxu0 0.0
  %677 = vmatprep.subr.mxu0 0.0
  %678 = vmatpush2.msra.mxu0 0.0
  %679 = vmatprep.subr.mxu0 0.0
  %680 = vmatpush2.msra.mxu0 0.0
  %681 = vmatprep.subr.mxu0 0.0
  %682 = vmatpush2.msra.mxu0 0.0
  %683 = vmatprep.subr.mxu0 0.0
  %684 = vmatpush2.msra.mxu0 0.0
  %685 = vmatprep.subr.mxu0 0.0
  %686 = vmatpush2.msra.mxu0 0.0
  %687 = vmatprep.subr.mxu0 0.0
  %688 = vmatpush2.msra.mxu0 0.0
  %689 = vmatprep.subr.mxu0 0.0
  %690 = vmatpush2.msra.mxu0 0.0
  %691 = vmatprep.mubr.f32.mxu0 0.0
  %692 = vmatmul.mubr.f32.gmra.mxu0 %v625
  %v693 = vpop.f32.mrf.mxu0
  %v694 = vadd.f32 0.0, %v693
  %v695 = vpop.f32.mrf.mxu0
  %v696 = vadd.f32 0.0, %v695
  %697 = vdwg.mxu0
  %v698 = vadd.f32 %v612, %v694
  %v699 = vadd.f32 %v613, %v696
  %v700 = vld [vmem:[%s1 + $0x40] sm:$0xff]
  %701 = vrot.lane.b32.xlu0 %v44, 118
  %v702 = vpop.permute.xlu0 %701
  %703 = vrot.lane.b32.xlu0 %v45, 118
  %v704 = vpop.permute.xlu0 %703
  %vm705 = vcmask 965632
  %v706 = vsel %vm705, %v702, %v704
  %v710 = vsel %vm49, %v700, 0
  %712 = vmatprep.subr.mxu0 0.0
  %713 = vmatpush1.msra.mxu0 0.0
  %714 = vmatprep.subr.mxu0 0.0
  %715 = vmatpush1.msra.mxu0 0.0
  %716 = vmatprep.subr.mxu0 0.0
  %717 = vmatpush1.msra.mxu0 0.0
  %718 = vmatprep.subr.mxu0 0.0
  %719 = vmatpush1.msra.mxu0 0.0
  %720 = vmatprep.subr.mxu0 0.0
  %721 = vmatpush1.msra.mxu0 0.0
  %722 = vmatprep.subr.mxu0 0.0
  %723 = vmatpush1.msra.mxu0 0.0
  %724 = vmatprep.subr.mxu0 0.0
  %725 = vmatpush1.msra.mxu0 0.0
  %726 = vmatprep.subr.mxu0 0.0
  %727 = vmatpush1.msra.mxu0 0.0
  %728 = vmatprep.subr.mxu0 0.0
  %729 = vmatpush1.msra.mxu0 0.0
  %730 = vmatprep.subr.mxu0 0.0
  %731 = vmatpush1.msra.mxu0 0.0
  %732 = vmatprep.subr.mxu0 0.0
  %733 = vmatpush1.msra.mxu0 0.0
  %734 = vmatprep.subr.mxu0 0.0
  %735 = vmatpush1.msra.mxu0 0.0
  %736 = vmatprep.subr.mxu0 0.0
  %737 = vmatpush1.msra.mxu0 0.0
  %738 = vmatprep.subr.mxu0 0.0
  %739 = vmatpush1.msra.mxu0 0.0
  %740 = vmatprep.subr.mxu0 0.0
  %741 = vmatpush1.msra.mxu0 0.0
  %742 = vmatprep.subr.mxu0 %v704
  %743 = vmatpush1.msra.mxu0 %v706
  %744 = vmatprep.subr.mxu0 0.0
  %745 = vmatpush2.msra.mxu0 0.0
  %746 = vmatprep.subr.mxu0 0.0
  %747 = vmatpush2.msra.mxu0 0.0
  %748 = vmatprep.subr.mxu0 0.0
  %749 = vmatpush2.msra.mxu0 0.0
  %750 = vmatprep.subr.mxu0 0.0
  %751 = vmatpush2.msra.mxu0 0.0
  %752 = vmatprep.subr.mxu0 0.0
  %753 = vmatpush2.msra.mxu0 0.0
  %754 = vmatprep.subr.mxu0 0.0
  %755 = vmatpush2.msra.mxu0 0.0
  %756 = vmatprep.subr.mxu0 0.0
  %757 = vmatpush2.msra.mxu0 0.0
  %758 = vmatprep.subr.mxu0 0.0
  %759 = vmatpush2.msra.mxu0 0.0
  %760 = vmatprep.subr.mxu0 0.0
  %761 = vmatpush2.msra.mxu0 0.0
  %762 = vmatprep.subr.mxu0 0.0
  %763 = vmatpush2.msra.mxu0 0.0
  %764 = vmatprep.subr.mxu0 0.0
  %765 = vmatpush2.msra.mxu0 0.0
  %766 = vmatprep.subr.mxu0 0.0
  %767 = vmatpush2.msra.mxu0 0.0
  %768 = vmatprep.subr.mxu0 0.0
  %769 = vmatpush2.msra.mxu0 0.0
  %770 = vmatprep.subr.mxu0 0.0
  %771 = vmatpush2.msra.mxu0 0.0
  %772 = vmatprep.subr.mxu0 0.0
  %773 = vmatpush2.msra.mxu0 0.0
  %774 = vmatprep.subr.mxu0 0.0
  %775 = vmatpush2.msra.mxu0 0.0
  %776 = vmatprep.mubr.f32.mxu0 0.0
  %777 = vmatmul.mubr.f32.gmra.mxu0 %v710
  %v778 = vpop.f32.mrf.mxu0
  %v779 = vadd.f32 0.0, %v778
  %v780 = vpop.f32.mrf.mxu0
  %v781 = vadd.f32 0.0, %v780
  %782 = vdwg.mxu0
  %v783 = vadd.f32 %v698, %v779
  %v784 = vadd.f32 %v699, %v781
  %v785 = vld [vmem:[%s2] sm:$0xff]
  %787 = vset.pattern.permute.xlu0 0
  %788 = vperm.xlu0 %787, %v785
  %v789 = vpop.permute.xlu0 %788
  %v791 = vadd.f32 %v783, %v789
  %v792 = vadd.f32 %v784, %v789
  %v793 = vmul.f32 %v791, 0.5
  %v794 = vmul.f32 %v792, 0.5
  %v795 = vmul.f32 %v791, 0.70710677
  %v796 = vmul.f32 %v792, 0.70710677
  %v797 = vand.u32 2147483647, %v795
  %v798 = vand.u32 2147483647, %v796
  %v799 = vmul.f32 %v797, 0.3275911
  %v800 = vmul.f32 %v798, 0.3275911
  %v801 = vadd.f32 %v799, 1.0
  %v802 = vadd.f32 %v800, 1.0
  %v803 = vrcp.pop %v801
  %v804 = vmul.f32 1.0, %v803
  %v805 = vrcp.pop %v802
  %v806 = vmul.f32 1.0, %v805
  %v807 = vmul.f32 %v804, 1.0614054
  %v808 = vmul.f32 %v806, 1.0614054
  %v809 = vadd.f32 %v807, -1.4531521
  %v810 = vadd.f32 %v808, -1.4531521
  %v811 = vmul.f32 %v804, %v809
  %v812 = vmul.f32 %v806, %v810
  %v813 = vadd.f32 %v811, 1.4214138
  %v814 = vadd.f32 %v812, 1.4214138
  %v815 = vmul.f32 %v804, %v813
  %v816 = vmul.f32 %v806, %v814
  %v817 = vadd.f32 %v815, -0.28449672
  %v818 = vadd.f32 %v816, -0.28449672
  %v819 = vmul.f32 %v804, %v817
  %v820 = vmul.f32 %v806, %v818
  %v821 = vadd.f32 %v819, 0.2548296
  %v822 = vadd.f32 %v820, 0.2548296
  %v823 = vmul.f32 %v804, %v821
  %v824 = vmul.f32 %v806, %v822
  %v825 = vsub.f32 0.0, %v797
  %v826 = vsub.f32 0.0, %v798
  %v827 = vmul.f32 %v825, %v797
  %v828 = vmul.f32 %v826, %v798
  %v829 = vmul.f32 %v827, 1.442695
  %v830 = vpow.pop %v829
  %v831 = vmul.f32 %v828, 1.442695
  %v832 = vpow.pop %v831
  %v833 = vmul.f32 %v823, %v830
  %v834 = vmul.f32 %v824, %v832
  %v835 = vsub.f32 1.0, %v833
  %v836 = vsub.f32 1.0, %v834
  %vm837 = vcmp.ge.f32.partialorder %v795, 0.0
  %vm838 = vcmp.ge.f32.partialorder %v796, 0.0
  %v839 = vsub.f32 0.0, %v835
  %v840 = vsub.f32 0.0, %v836
  %v841 = vsel %vm837, %v835, %v839
  %v842 = vsel %vm838, %v836, %v840
  %v843 = vadd.f32 %v841, 1.0
  %v844 = vadd.f32 %v842, 1.0
  %v845 = vmul.f32 %v793, %v843
  %v846 = vmul.f32 %v794, %v844
  %v847 = vsel %vm32, 1, 0
  %v848 = vlaneseq
  %v849 = vshrl.u32 %v848, 7
  %v850 = vsub.s32 0, %v849
  %v851 = vrot.slane %v847, %v850
  %v852 = vlaneseq
  %v853 = vshrl.u32 %v852, 7
  %v854 = vsub.s32 1, %v853
  %v855 = vrot.slane %v847, %v854
  %vm856 = vcmp.eq.s32.totalorder %v851, 1
  %vm857 = vcmp.eq.s32.totalorder %v855, 1
  %v858 = vsel %vm856, %v845, 0.0
  %v859 = vsel %vm857, %v846, 0.0
  %860 = vst [vmem:[#allocation2] sm:$0xff] %v858
  %vm861 = vcmask 277504
  %862 = vst.msk [vmem:[#allocation2 + $0x8] sm:$0xff] %vm861, %v859
  %v863 = vld [vmem:[%s3] sm:$0xff]
  %v864 = vld [vmem:[%s3 + $0x8] sm:$0xff]
  %v865 = vld [vmem:[#allocation2] sm:$0xff]
  %v866 = vld [vmem:[#allocation2 + $0x8] sm:$0xff]
  %v867 = vld [vmem:[%s3 + $0x10] sm:$0xff]
  %v868 = vld [vmem:[%s3 + $0x18] sm:$0xff]
  %871 = vrot.lane.b32.xlu0 %v865, 127
  %v872 = vpop.permute.xlu0 %871
  %873 = vrot.lane.b32.xlu0 %v866, 127
  %v874 = vpop.permute.xlu0 %873
  %v875 = vsel %vm205, %v872, %v874
  %v879 = vsel %vm49, %v867, 0
  %v882 = vsel %vm49, %v868, 0
  %884 = vmatprep.subr.mxu0 0.0
  %885 = vmatpush1.msra.mxu0 0.0
  %886 = vmatprep.subr.mxu0 0.0
  %887 = vmatpush1.msra.mxu0 0.0
  %888 = vmatprep.subr.mxu0 0.0
  %889 = vmatpush1.msra.mxu0 0.0
  %890 = vmatprep.subr.mxu0 0.0
  %891 = vmatpush1.msra.mxu0 0.0
  %892 = vmatprep.subr.mxu0 0.0
  %893 = vmatpush1.msra.mxu0 0.0
  %894 = vmatprep.subr.mxu0 0.0
  %895 = vmatpush1.msra.mxu0 0.0
  %896 = vmatprep.subr.mxu0 0.0
  %897 = vmatpush1.msra.mxu0 0.0
  %898 = vmatprep.subr.mxu0 0.0
  %899 = vmatpush1.msra.mxu0 0.0
  %900 = vmatprep.subr.mxu0 0.0
  %901 = vmatpush1.msra.mxu0 0.0
  %902 = vmatprep.subr.mxu0 0.0
  %903 = vmatpush1.msra.mxu0 0.0
  %904 = vmatprep.subr.mxu0 0.0
  %905 = vmatpush1.msra.mxu0 0.0
  %906 = vmatprep.subr.mxu0 0.0
  %907 = vmatpush1.msra.mxu0 0.0
  %908 = vmatprep.subr.mxu0 0.0
  %909 = vmatpush1.msra.mxu0 0.0
  %910 = vmatprep.subr.mxu0 0.0
  %911 = vmatpush1.msra.mxu0 0.0
  %912 = vmatprep.subr.mxu0 0.0
  %913 = vmatpush1.msra.mxu0 0.0
  %914 = vmatprep.subr.mxu0 %v874
  %915 = vmatpush1.msra.mxu0 %v875
  %916 = vmatprep.subr.mxu0 0.0
  %917 = vmatpush2.msra.mxu0 0.0
  %918 = vmatprep.subr.mxu0 0.0
  %919 = vmatpush2.msra.mxu0 0.0
  %920 = vmatprep.subr.mxu0 0.0
  %921 = vmatpush2.msra.mxu0 0.0
  %922 = vmatprep.subr.mxu0 0.0
  %923 = vmatpush2.msra.mxu0 0.0
  %924 = vmatprep.subr.mxu0 0.0
  %925 = vmatpush2.msra.mxu0 0.0
  %926 = vmatprep.subr.mxu0 0.0
  %927 = vmatpush2.msra.mxu0 0.0
  %928 = vmatprep.subr.mxu0 0.0
  %929 = vmatpush2.msra.mxu0 0.0
  %930 = vmatprep.subr.mxu0 0.0
  %931 = vmatpush2.msra.mxu0 0.0
  %932 = vmatprep.subr.mxu0 0.0
  %933 = vmatpush2.msra.mxu0 0.0
  %934 = vmatprep.subr.mxu0 0.0
  %935 = vmatpush2.msra.mxu0 0.0
  %936 = vmatprep.subr.mxu0 0.0
  %937 = vmatpush2.msra.mxu0 0.0
  %938 = vmatprep.subr.mxu0 0.0
  %939 = vmatpush2.msra.mxu0 0.0
  %940 = vmatprep.subr.mxu0 0.0
  %941 = vmatpush2.msra.mxu0 0.0
  %942 = vmatprep.subr.mxu0 0.0
  %943 = vmatpush2.msra.mxu0 0.0
  %944 = vmatprep.subr.mxu0 0.0
  %945 = vmatpush2.msra.mxu0 0.0
  %946 = vmatprep.subr.mxu0 0.0
  %947 = vmatpush2.msra.mxu0 0.0
  %948 = vmatprep.mubr.f32.mxu0 0.0
  %949 = vmatmul.mubr.f32.gmra.mxu0 %v879
  %v950 = vpop.f32.mrf.mxu0
  %v951 = vadd.f32 0.0, %v950
  %v952 = vpop.f32.mrf.mxu0
  %v953 = vadd.f32 0.0, %v952
  %954 = vmatprep.mubr.f32.mxu0 0.0
  %955 = vmatmul.mubr.f32.gmra.mxu0 %v882
  %v956 = vpop.f32.mrf.mxu0
  %v957 = vadd.f32 0.0, %v956
  %v958 = vpop.f32.mrf.mxu0
  %v959 = vadd.f32 0.0, %v958
  %960 = vdwg.mxu0
  %v962 = vsel %vm49, %v863, 0
  %v965 = vsel %vm49, %v864, 0
  %967 = vmatprep.subr.mxu0 0.0
  %968 = vmatpush1.msra.mxu0 0.0
  %969 = vmatprep.subr.mxu0 0.0
  %970 = vmatpush1.msra.mxu0 0.0
  %971 = vmatprep.subr.mxu0 0.0
  %972 = vmatpush1.msra.mxu0 0.0
  %973 = vmatprep.subr.mxu0 0.0
  %974 = vmatpush1.msra.mxu0 0.0
  %975 = vmatprep.subr.mxu0 0.0
  %976 = vmatpush1.msra.mxu0 0.0
  %977 = vmatprep.subr.mxu0 0.0
  %978 = vmatpush1.msra.mxu0 0.0
  %979 = vmatprep.subr.mxu0 0.0
  %980 = vmatpush1.msra.mxu0 0.0
  %981 = vmatprep.subr.mxu0 0.0
  %982 = vmatpush1.msra.mxu0 0.0
  %983 = vmatprep.subr.mxu0 0.0
  %984 = vmatpush1.msra.mxu0 0.0
  %985 = vmatprep.subr.mxu0 0.0
  %986 = vmatpush1.msra.mxu0 0.0
  %987 = vmatprep.subr.mxu0 0.0
  %988 = vmatpush1.msra.mxu0 0.0
  %989 = vmatprep.subr.mxu0 0.0
  %990 = vmatpush1.msra.mxu0 0.0
  %991 = vmatprep.subr.mxu0 0.0
  %992 = vmatpush1.msra.mxu0 0.0
  %993 = vmatprep.subr.mxu0 0.0
  %994 = vmatpush1.msra.mxu0 0.0
  %995 = vmatprep.subr.mxu0 0.0
  %996 = vmatpush1.msra.mxu0 0.0
  %997 = vmatprep.subr.mxu0 %v866
  %998 = vmatpush1.msra.mxu0 %v865
  %999 = vmatprep.subr.mxu0 0.0
  %1000 = vmatpush2.msra.mxu0 0.0
  %1001 = vmatprep.subr.mxu0 0.0
  %1002 = vmatpush2.msra.mxu0 0.0
  %1003 = vmatprep.subr.mxu0 0.0
  %1004 = vmatpush2.msra.mxu0 0.0
  %1005 = vmatprep.subr.mxu0 0.0
  %1006 = vmatpush2.msra.mxu0 0.0
  %1007 = vmatprep.subr.mxu0 0.0
  %1008 = vmatpush2.msra.mxu0 0.0
  %1009 = vmatprep.subr.mxu0 0.0
  %1010 = vmatpush2.msra.mxu0 0.0
  %1011 = vmatprep.subr.mxu0 0.0
  %1012 = vmatpush2.msra.mxu0 0.0
  %1013 = vmatprep.subr.mxu0 0.0
  %1014 = vmatpush2.msra.mxu0 0.0
  %1015 = vmatprep.subr.mxu0 0.0
  %1016 = vmatpush2.msra.mxu0 0.0
  %1017 = vmatprep.subr.mxu0 0.0
  %1018 = vmatpush2.msra.mxu0 0.0
  %1019 = vmatprep.subr.mxu0 0.0
  %1020 = vmatpush2.msra.mxu0 0.0
  %1021 = vmatprep.subr.mxu0 0.0
  %1022 = vmatpush2.msra.mxu0 0.0
  %1023 = vmatprep.subr.mxu0 0.0
  %1024 = vmatpush2.msra.mxu0 0.0
  %1025 = vmatprep.subr.mxu0 0.0
  %1026 = vmatpush2.msra.mxu0 0.0
  %1027 = vmatprep.subr.mxu0 0.0
  %1028 = vmatpush2.msra.mxu0 0.0
  %1029 = vmatprep.subr.mxu0 0.0
  %1030 = vmatpush2.msra.mxu0 0.0
  %1031 = vmatprep.mubr.f32.mxu0 0.0
  %1032 = vmatmul.mubr.f32.gmra.mxu0 %v962
  %v1033 = vpop.f32.mrf.mxu0
  %v1034 = vadd.f32 %v951, %v1033
  %v1035 = vpop.f32.mrf.mxu0
  %v1036 = vadd.f32 %v953, %v1035
  %1037 = vmatprep.mubr.f32.mxu0 0.0
  %1038 = vmatmul.mubr.f32.gmra.mxu0 %v965
  %v1039 = vpop.f32.mrf.mxu0
  %v1040 = vadd.f32 %v957, %v1039
  %v1041 = vpop.f32.mrf.mxu0
  %v1042 = vadd.f32 %v959, %v1041
  %1043 = vdwg.mxu0
  %v1044 = vld [vmem:[%s3 + $0x20] sm:$0xff]
  %v1045 = vld [vmem:[%s3 + $0x28] sm:$0xff]
  %1046 = vrot.lane.b32.xlu0 %v865, 119
  %v1047 = vpop.permute.xlu0 %1046
  %1048 = vrot.lane.b32.xlu0 %v866, 119
  %v1049 = vpop.permute.xlu0 %1048
  %v1050 = vsel %vm534, %v1047, %v1049
  %v1054 = vsel %vm49, %v1044, 0
  %v1057 = vsel %vm49, %v1045, 0
  %1059 = vmatprep.subr.mxu0 0.0
  %1060 = vmatpush1.msra.mxu0 0.0
  %1061 = vmatprep.subr.mxu0 0.0
  %1062 = vmatpush1.msra.mxu0 0.0
  %1063 = vmatprep.subr.mxu0 0.0
  %1064 = vmatpush1.msra.mxu0 0.0
  %1065 = vmatprep.subr.mxu0 0.0
  %1066 = vmatpush1.msra.mxu0 0.0
  %1067 = vmatprep.subr.mxu0 0.0
  %1068 = vmatpush1.msra.mxu0 0.0
  %1069 = vmatprep.subr.mxu0 0.0
  %1070 = vmatpush1.msra.mxu0 0.0
  %1071 = vmatprep.subr.mxu0 0.0
  %1072 = vmatpush1.msra.mxu0 0.0
  %1073 = vmatprep.subr.mxu0 0.0
  %1074 = vmatpush1.msra.mxu0 0.0
  %1075 = vmatprep.subr.mxu0 0.0
  %1076 = vmatpush1.msra.mxu0 0.0
  %1077 = vmatprep.subr.mxu0 0.0
  %1078 = vmatpush1.msra.mxu0 0.0
  %1079 = vmatprep.subr.mxu0 0.0
  %1080 = vmatpush1.msra.mxu0 0.0
  %1081 = vmatprep.subr.mxu0 0.0
  %1082 = vmatpush1.msra.mxu0 0.0
  %1083 = vmatprep.subr.mxu0 0.0
  %1084 = vmatpush1.msra.mxu0 0.0
  %1085 = vmatprep.subr.mxu0 0.0
  %1086 = vmatpush1.msra.mxu0 0.0
  %1087 = vmatprep.subr.mxu0 0.0
  %1088 = vmatpush1.msra.mxu0 0.0
  %1089 = vmatprep.subr.mxu0 %v1049
  %1090 = vmatpush1.msra.mxu0 %v1050
  %1091 = vmatprep.subr.mxu0 0.0
  %1092 = vmatpush2.msra.mxu0 0.0
  %1093 = vmatprep.subr.mxu0 0.0
  %1094 = vmatpush2.msra.mxu0 0.0
  %1095 = vmatprep.subr.mxu0 0.0
  %1096 = vmatpush2.msra.mxu0 0.0
  %1097 = vmatprep.subr.mxu0 0.0
  %1098 = vmatpush2.msra.mxu0 0.0
  %1099 = vmatprep.subr.mxu0 0.0
  %1100 = vmatpush2.msra.mxu0 0.0
  %1101 = vmatprep.subr.mxu0 0.0
  %1102 = vmatpush2.msra.mxu0 0.0
  %1103 = vmatprep.subr.mxu0 0.0
  %1104 = vmatpush2.msra.mxu0 0.0
  %1105 = vmatprep.subr.mxu0 0.0
  %1106 = vmatpush2.msra.mxu0 0.0
  %1107 = vmatprep.subr.mxu0 0.0
  %1108 = vmatpush2.msra.mxu0 0.0
  %1109 = vmatprep.subr.mxu0 0.0
  %1110 = vmatpush2.msra.mxu0 0.0
  %1111 = vmatprep.subr.mxu0 0.0
  %1112 = vmatpush2.msra.mxu0 0.0
  %1113 = vmatprep.subr.mxu0 0.0
  %1114 = vmatpush2.msra.mxu0 0.0
  %1115 = vmatprep.subr.mxu0 0.0
  %1116 = vmatpush2.msra.mxu0 0.0
  %1117 = vmatprep.subr.mxu0 0.0
  %1118 = vmatpush2.msra.mxu0 0.0
  %1119 = vmatprep.subr.mxu0 0.0
  %1120 = vmatpush2.msra.mxu0 0.0
  %1121 = vmatprep.subr.mxu0 0.0
  %1122 = vmatpush2.msra.mxu0 0.0
  %1123 = vmatprep.mubr.f32.mxu0 0.0
  %1124 = vmatmul.mubr.f32.gmra.mxu0 %v1054
  %v1125 = vpop.f32.mrf.mxu0
  %v1126 = vadd.f32 0.0, %v1125
  %v1127 = vpop.f32.mrf.mxu0
  %v1128 = vadd.f32 0.0, %v1127
  %1129 = vmatprep.mubr.f32.mxu0 0.0
  %1130 = vmatmul.mubr.f32.gmra.mxu0 %v1057
  %v1131 = vpop.f32.mrf.mxu0
  %v1132 = vadd.f32 0.0, %v1131
  %v1133 = vpop.f32.mrf.mxu0
  %v1134 = vadd.f32 0.0, %v1133
  %1135 = vdwg.mxu0
  %v1136 = vadd.f32 %v1034, %v1126
  %v1137 = vadd.f32 %v1036, %v1128
  %v1138 = vadd.f32 %v1040, %v1132
  %v1139 = vadd.f32 %v1042, %v1134
  %v1140 = vld [vmem:[%s3 + $0x30] sm:$0xff]
  %v1141 = vld [vmem:[%s3 + $0x38] sm:$0xff]
  %1142 = vrot.lane.b32.xlu0 %v865, 118
  %v1143 = vpop.permute.xlu0 %1142
  %1144 = vrot.lane.b32.xlu0 %v866, 118
  %v1145 = vpop.permute.xlu0 %1144
  %v1146 = vsel %vm705, %v1143, %v1145
  %v1150 = vsel %vm49, %v1140, 0
  %v1153 = vsel %vm49, %v1141, 0
  %1155 = vmatprep.subr.mxu0 0.0
  %1156 = vmatpush1.msra.mxu0 0.0
  %1157 = vmatprep.subr.mxu0 0.0
  %1158 = vmatpush1.msra.mxu0 0.0
  %1159 = vmatprep.subr.mxu0 0.0
  %1160 = vmatpush1.msra.mxu0 0.0
  %1161 = vmatprep.subr.mxu0 0.0
  %1162 = vmatpush1.msra.mxu0 0.0
  %1163 = vmatprep.subr.mxu0 0.0
  %1164 = vmatpush1.msra.mxu0 0.0
  %1165 = vmatprep.subr.mxu0 0.0
  %1166 = vmatpush1.msra.mxu0 0.0
  %1167 = vmatprep.subr.mxu0 0.0
  %1168 = vmatpush1.msra.mxu0 0.0
  %1169 = vmatprep.subr.mxu0 0.0
  %1170 = vmatpush1.msra.mxu0 0.0
  %1171 = vmatprep.subr.mxu0 0.0
  %1172 = vmatpush1.msra.mxu0 0.0
  %1173 = vmatprep.subr.mxu0 0.0
  %1174 = vmatpush1.msra.mxu0 0.0
  %1175 = vmatprep.subr.mxu0 0.0
  %1176 = vmatpush1.msra.mxu0 0.0
  %1177 = vmatprep.subr.mxu0 0.0
  %1178 = vmatpush1.msra.mxu0 0.0
  %1179 = vmatprep.subr.mxu0 0.0
  %1180 = vmatpush1.msra.mxu0 0.0
  %1181 = vmatprep.subr.mxu0 0.0
  %1182 = vmatpush1.msra.mxu0 0.0
  %1183 = vmatprep.subr.mxu0 0.0
  %1184 = vmatpush1.msra.mxu0 0.0
  %1185 = vmatprep.subr.mxu0 %v1145
  %1186 = vmatpush1.msra.mxu0 %v1146
  %1187 = vmatprep.subr.mxu0 0.0
  %1188 = vmatpush2.msra.mxu0 0.0
  %1189 = vmatprep.subr.mxu0 0.0
  %1190 = vmatpush2.msra.mxu0 0.0
  %1191 = vmatprep.subr.mxu0 0.0
  %1192 = vmatpush2.msra.mxu0 0.0
  %1193 = vmatprep.subr.mxu0 0.0
  %1194 = vmatpush2.msra.mxu0 0.0
  %1195 = vmatprep.subr.mxu0 0.0
  %1196 = vmatpush2.msra.mxu0 0.0
  %1197 = vmatprep.subr.mxu0 0.0
  %1198 = vmatpush2.msra.mxu0 0.0
  %1199 = vmatprep.subr.mxu0 0.0
  %1200 = vmatpush2.msra.mxu0 0.0
  %1201 = vmatprep.subr.mxu0 0.0
  %1202 = vmatpush2.msra.mxu0 0.0
  %1203 = vmatprep.subr.mxu0 0.0
  %1204 = vmatpush2.msra.mxu0 0.0
  %1205 = vmatprep.subr.mxu0 0.0
  %1206 = vmatpush2.msra.mxu0 0.0
  %1207 = vmatprep.subr.mxu0 0.0
  %1208 = vmatpush2.msra.mxu0 0.0
  %1209 = vmatprep.subr.mxu0 0.0
  %1210 = vmatpush2.msra.mxu0 0.0
  %1211 = vmatprep.subr.mxu0 0.0
  %1212 = vmatpush2.msra.mxu0 0.0
  %1213 = vmatprep.subr.mxu0 0.0
  %1214 = vmatpush2.msra.mxu0 0.0
  %1215 = vmatprep.subr.mxu0 0.0
  %1216 = vmatpush2.msra.mxu0 0.0
  %1217 = vmatprep.subr.mxu0 0.0
  %1218 = vmatpush2.msra.mxu0 0.0
  %1219 = vmatprep.mubr.f32.mxu0 0.0
  %1220 = vmatmul.mubr.f32.gmra.mxu0 %v1150
  %v1221 = vpop.f32.mrf.mxu0
  %v1222 = vadd.f32 0.0, %v1221
  %v1223 = vpop.f32.mrf.mxu0
  %v1224 = vadd.f32 0.0, %v1223
  %1225 = vmatprep.mubr.f32.mxu0 0.0
  %1226 = vmatmul.mubr.f32.gmra.mxu0 %v1153
  %v1227 = vpop.f32.mrf.mxu0
  %v1228 = vadd.f32 0.0, %v1227
  %v1229 = vpop.f32.mrf.mxu0
  %v1230 = vadd.f32 0.0, %v1229
  %1231 = vdwg.mxu0
  %v1232 = vadd.f32 %v1136, %v1222
  %v1233 = vadd.f32 %v1137, %v1224
  %v1234 = vadd.f32 %v1138, %v1228
  %v1235 = vadd.f32 %v1139, %v1230
  %v1236 = vld [vmem:[%s4] sm:$0xff]
  %v1237 = vld [vmem:[%s4 + $0x8] sm:$0xff]
  %1239 = vset.pattern.permute.xlu0 0
  %1240 = vperm.xlu0 %1239, %v1236
  %v1241 = vpop.permute.xlu0 %1240
  %1244 = vset.pattern.permute.xlu0 0
  %1245 = vperm.xlu0 %1244, %v1237
  %v1246 = vpop.permute.xlu0 %1245
  %v1248 = vadd.f32 %v1232, %v1241
  %v1249 = vadd.f32 %v1233, %v1241
  %v1250 = vadd.f32 %v1234, %v1246
  %v1251 = vadd.f32 %v1235, %v1246
  %v1252 = vsel %vm856, %v1248, 0.0
  %v1253 = vsel %vm857, %v1249, 0.0
  %v1254 = vsel %vm856, %v1250, 0.0
  %v1255 = vsel %vm857, %v1251, 0.0
  %1256 = vst [vmem:[#allocation3] sm:$0xff] %v1252
  %1257 = vst.msk [vmem:[#allocation3 + $0x8] sm:$0xff] %vm861, %v1253
  %1258 = vst [vmem:[#allocation3 + $0x10] sm:$0xff] %v1254
  %1259 = vst.msk [vmem:[#allocation3 + $0x18] sm:$0xff] %vm861, %v1255
  %v1260 = vld [vmem:[%s5] sm:$0xff]
  %v1261 = vld [vmem:[%s5 + $0x8] sm:$0xff]
  %v1262 = vld [vmem:[#allocation3] sm:$0xf]
  %v1263 = vld [vmem:[#allocation3 + $0x8] sm:$0xf]
  %v1264 = vld [vmem:[%s5 + $0x10] sm:$0xff]
  %v1265 = vld [vmem:[%s5 + $0x18] sm:$0xff]
  %v1266 = vld [vmem:[#allocation3] sm:$0xf0]
  %v1267 = vld [vmem:[#allocation3 + $0x8] sm:$0xf0]
  %v1270 = vrot.slane %v1266, 4
  %v1271 = vrot.slane %v1267, 4
  %vm1272 = vcmask 31744
  %v1274 = vsel %vm1272, %v1264, 0
  %v1277 = vsel %vm1272, %v1265, 0
  %vm1279 = vcmask 1043456
  %v1280 = vsel %vm1279, %v1270, 0
  %v1282 = vsel %vm1279, %v1271, 0
  %1284 = vmatprep.subr.mxu0 0.0
  %1285 = vmatpush1.msra.mxu0 0.0
  %1286 = vmatprep.subr.mxu0 0.0
  %1287 = vmatpush1.msra.mxu0 0.0
  %1288 = vmatprep.subr.mxu0 0.0
  %1289 = vmatpush1.msra.mxu0 0.0
  %1290 = vmatprep.subr.mxu0 0.0
  %1291 = vmatpush1.msra.mxu0 0.0
  %1292 = vmatprep.subr.mxu0 0.0
  %1293 = vmatpush1.msra.mxu0 0.0
  %1294 = vmatprep.subr.mxu0 0.0
  %1295 = vmatpush1.msra.mxu0 0.0
  %1296 = vmatprep.subr.mxu0 0.0
  %1297 = vmatpush1.msra.mxu0 0.0
  %1298 = vmatprep.subr.mxu0 0.0
  %1299 = vmatpush1.msra.mxu0 0.0
  %1300 = vmatprep.subr.mxu0 0.0
  %1301 = vmatpush1.msra.mxu0 0.0
  %1302 = vmatprep.subr.mxu0 0.0
  %1303 = vmatpush1.msra.mxu0 0.0
  %1304 = vmatprep.subr.mxu0 0.0
  %1305 = vmatpush1.msra.mxu0 0.0
  %1306 = vmatprep.subr.mxu0 0.0
  %1307 = vmatpush1.msra.mxu0 0.0
  %1308 = vmatprep.subr.mxu0 0.0
  %1309 = vmatpush1.msra.mxu0 0.0
  %1310 = vmatprep.subr.mxu0 0.0
  %1311 = vmatpush1.msra.mxu0 0.0
  %1312 = vmatprep.subr.mxu0 0.0
  %1313 = vmatpush1.msra.mxu0 0.0
  %1314 = vmatprep.subr.mxu0 %v1282
  %1315 = vmatpush1.msra.mxu0 %v1280
  %1316 = vmatprep.subr.mxu0 0.0
  %1317 = vmatpush2.msra.mxu0 0.0
  %1318 = vmatprep.subr.mxu0 0.0
  %1319 = vmatpush2.msra.mxu0 0.0
  %1320 = vmatprep.subr.mxu0 0.0
  %1321 = vmatpush2.msra.mxu0 0.0
  %1322 = vmatprep.subr.mxu0 0.0
  %1323 = vmatpush2.msra.mxu0 0.0
  %1324 = vmatprep.subr.mxu0 0.0
  %1325 = vmatpush2.msra.mxu0 0.0
  %1326 = vmatprep.subr.mxu0 0.0
  %1327 = vmatpush2.msra.mxu0 0.0
  %1328 = vmatprep.subr.mxu0 0.0
  %1329 = vmatpush2.msra.mxu0 0.0
  %1330 = vmatprep.subr.mxu0 0.0
  %1331 = vmatpush2.msra.mxu0 0.0
  %1332 = vmatprep.subr.mxu0 0.0
  %1333 = vmatpush2.msra.mxu0 0.0
  %1334 = vmatprep.subr.mxu0 0.0
  %1335 = vmatpush2.msra.mxu0 0.0
  %1336 = vmatprep.subr.mxu0 0.0
  %1337 = vmatpush2.msra.mxu0 0.0
  %1338 = vmatprep.subr.mxu0 0.0
  %1339 = vmatpush2.msra.mxu0 0.0
  %1340 = vmatprep.subr.mxu0 0.0
  %1341 = vmatpush2.msra.mxu0 0.0
  %1342 = vmatprep.subr.mxu0 0.0
  %1343 = vmatpush2.msra.mxu0 0.0
  %1344 = vmatprep.subr.mxu0 0.0
  %1345 = vmatpush2.msra.mxu0 0.0
  %1346 = vmatprep.subr.mxu0 0.0
  %1347 = vmatpush2.msra.mxu0 0.0
  %1348 = vmatprep.mubr.f32.mxu0 0.0
  %1349 = vmatmul.mubr.f32.gmra.mxu0 %v1274
  %v1350 = vpop.f32.mrf.mxu0
  %v1351 = vadd.f32 0.0, %v1350
  %v1352 = vpop.f32.mrf.mxu0
  %v1353 = vadd.f32 0.0, %v1352
  %1354 = vmatprep.mubr.f32.mxu0 0.0
  %1355 = vmatmul.mubr.f32.gmra.mxu0 %v1277
  %v1356 = vpop.f32.mrf.mxu0
  %v1357 = vadd.f32 0.0, %v1356
  %v1358 = vpop.f32.mrf.mxu0
  %v1359 = vadd.f32 0.0, %v1358
  %1360 = vdwg.mxu0
  %v1362 = vsel %vm1272, %v1260, 0
  %v1365 = vsel %vm1272, %v1261, 0
  %v1368 = vsel %vm1279, %v1262, 0
  %v1371 = vsel %vm1279, %v1263, 0
  %1373 = vmatprep.subr.mxu0 0.0
  %1374 = vmatpush1.msra.mxu0 0.0
  %1375 = vmatprep.subr.mxu0 0.0
  %1376 = vmatpush1.msra.mxu0 0.0
  %1377 = vmatprep.subr.mxu0 0.0
  %1378 = vmatpush1.msra.mxu0 0.0
  %1379 = vmatprep.subr.mxu0 0.0
  %1380 = vmatpush1.msra.mxu0 0.0
  %1381 = vmatprep.subr.mxu0 0.0
  %1382 = vmatpush1.msra.mxu0 0.0
  %1383 = vmatprep.subr.mxu0 0.0
  %1384 = vmatpush1.msra.mxu0 0.0
  %1385 = vmatprep.subr.mxu0 0.0
  %1386 = vmatpush1.msra.mxu0 0.0
  %1387 = vmatprep.subr.mxu0 0.0
  %1388 = vmatpush1.msra.mxu0 0.0
  %1389 = vmatprep.subr.mxu0 0.0
  %1390 = vmatpush1.msra.mxu0 0.0
  %1391 = vmatprep.subr.mxu0 0.0
  %1392 = vmatpush1.msra.mxu0 0.0
  %1393 = vmatprep.subr.mxu0 0.0
  %1394 = vmatpush1.msra.mxu0 0.0
  %1395 = vmatprep.subr.mxu0 0.0
  %1396 = vmatpush1.msra.mxu0 0.0
  %1397 = vmatprep.subr.mxu0 0.0
  %1398 = vmatpush1.msra.mxu0 0.0
  %1399 = vmatprep.subr.mxu0 0.0
  %1400 = vmatpush1.msra.mxu0 0.0
  %1401 = vmatprep.subr.mxu0 0.0
  %1402 = vmatpush1.msra.mxu0 0.0
  %1403 = vmatprep.subr.mxu0 %v1371
  %1404 = vmatpush1.msra.mxu0 %v1368
  %1405 = vmatprep.subr.mxu0 0.0
  %1406 = vmatpush2.msra.mxu0 0.0
  %1407 = vmatprep.subr.mxu0 0.0
  %1408 = vmatpush2.msra.mxu0 0.0
  %1409 = vmatprep.subr.mxu0 0.0
  %1410 = vmatpush2.msra.mxu0 0.0
  %1411 = vmatprep.subr.mxu0 0.0
  %1412 = vmatpush2.msra.mxu0 0.0
  %1413 = vmatprep.subr.mxu0 0.0
  %1414 = vmatpush2.msra.mxu0 0.0
  %1415 = vmatprep.subr.mxu0 0.0
  %1416 = vmatpush2.msra.mxu0 0.0
  %1417 = vmatprep.subr.mxu0 0.0
  %1418 = vmatpush2.msra.mxu0 0.0
  %1419 = vmatprep.subr.mxu0 0.0
  %1420 = vmatpush2.msra.mxu0 0.0
  %1421 = vmatprep.subr.mxu0 0.0
  %1422 = vmatpush2.msra.mxu0 0.0
  %1423 = vmatprep.subr.mxu0 0.0
  %1424 = vmatpush2.msra.mxu0 0.0
  %1425 = vmatprep.subr.mxu0 0.0
  %1426 = vmatpush2.msra.mxu0 0.0
  %1427 = vmatprep.subr.mxu0 0.0
  %1428 = vmatpush2.msra.mxu0 0.0
  %1429 = vmatprep.subr.mxu0 0.0
  %1430 = vmatpush2.msra.mxu0 0.0
  %1431 = vmatprep.subr.mxu0 0.0
  %1432 = vmatpush2.msra.mxu0 0.0
  %1433 = vmatprep.subr.mxu0 0.0
  %1434 = vmatpush2.msra.mxu0 0.0
  %1435 = vmatprep.subr.mxu0 0.0
  %1436 = vmatpush2.msra.mxu0 0.0
  %1437 = vmatprep.mubr.f32.mxu0 0.0
  %1438 = vmatmul.mubr.f32.gmra.mxu0 %v1362
  %v1439 = vpop.f32.mrf.mxu0
  %v1440 = vadd.f32 %v1351, %v1439
  %v1441 = vpop.f32.mrf.mxu0
  %v1442 = vadd.f32 %v1353, %v1441
  %1443 = vmatprep.mubr.f32.mxu0 0.0
  %1444 = vmatmul.mubr.f32.gmra.mxu0 %v1365
  %v1445 = vpop.f32.mrf.mxu0
  %v1446 = vadd.f32 %v1357, %v1445
  %v1447 = vpop.f32.mrf.mxu0
  %v1448 = vadd.f32 %v1359, %v1447
  %1449 = vdwg.mxu0
  %v1450 = vld [vmem:[%s5 + $0x20] sm:$0xff]
  %v1451 = vld [vmem:[%s5 + $0x28] sm:$0xff]
  %1452 = vrot.lane.b32.xlu0 %v1262, 127
  %v1453 = vpop.permute.xlu0 %1452
  %1454 = vrot.lane.b32.xlu0 %v1263, 127
  %v1455 = vpop.permute.xlu0 %1454
  %v1456 = vsel %vm205, %v1453, %v1455
  %v1458 = vsel %vm1272, %v1450, 0
  %v1461 = vsel %vm1272, %v1451, 0
  %v1463 = vsel %vm1279, %v1456, 0
  %v1465 = vsel %vm1279, %v1455, 0
  %1467 = vmatprep.subr.mxu0 0.0
  %1468 = vmatpush1.msra.mxu0 0.0
  %1469 = vmatprep.subr.mxu0 0.0
  %1470 = vmatpush1.msra.mxu0 0.0
  %1471 = vmatprep.subr.mxu0 0.0
  %1472 = vmatpush1.msra.mxu0 0.0
  %1473 = vmatprep.subr.mxu0 0.0
  %1474 = vmatpush1.msra.mxu0 0.0
  %1475 = vmatprep.subr.mxu0 0.0
  %1476 = vmatpush1.msra.mxu0 0.0
  %1477 = vmatprep.subr.mxu0 0.0
  %1478 = vmatpush1.msra.mxu0 0.0
  %1479 = vmatprep.subr.mxu0 0.0
  %1480 = vmatpush1.msra.mxu0 0.0
  %1481 = vmatprep.subr.mxu0 0.0
  %1482 = vmatpush1.msra.mxu0 0.0
  %1483 = vmatprep.subr.mxu0 0.0
  %1484 = vmatpush1.msra.mxu0 0.0
  %1485 = vmatprep.subr.mxu0 0.0
  %1486 = vmatpush1.msra.mxu0 0.0
  %1487 = vmatprep.subr.mxu0 0.0
  %1488 = vmatpush1.msra.mxu0 0.0
  %1489 = vmatprep.subr.mxu0 0.0
  %1490 = vmatpush1.msra.mxu0 0.0
  %1491 = vmatprep.subr.mxu0 0.0
  %1492 = vmatpush1.msra.mxu0 0.0
  %1493 = vmatprep.subr.mxu0 0.0
  %1494 = vmatpush1.msra.mxu0 0.0
  %1495 = vmatprep.subr.mxu0 0.0
  %1496 = vmatpush1.msra.mxu0 0.0
  %1497 = vmatprep.subr.mxu0 %v1465
  %1498 = vmatpush1.msra.mxu0 %v1463
  %1499 = vmatprep.subr.mxu0 0.0
  %1500 = vmatpush2.msra.mxu0 0.0
  %1501 = vmatprep.subr.mxu0 0.0
  %1502 = vmatpush2.msra.mxu0 0.0
  %1503 = vmatprep.subr.mxu0 0.0
  %1504 = vmatpush2.msra.mxu0 0.0
  %1505 = vmatprep.subr.mxu0 0.0
  %1506 = vmatpush2.msra.mxu0 0.0
  %1507 = vmatprep.subr.mxu0 0.0
  %1508 = vmatpush2.msra.mxu0 0.0
  %1509 = vmatprep.subr.mxu0 0.0
  %1510 = vmatpush2.msra.mxu0 0.0
  %1511 = vmatprep.subr.mxu0 0.0
  %1512 = vmatpush2.msra.mxu0 0.0
  %1513 = vmatprep.subr.mxu0 0.0
  %1514 = vmatpush2.msra.mxu0 0.0
  %1515 = vmatprep.subr.mxu0 0.0
  %1516 = vmatpush2.msra.mxu0 0.0
  %1517 = vmatprep.subr.mxu0 0.0
  %1518 = vmatpush2.msra.mxu0 0.0
  %1519 = vmatprep.subr.mxu0 0.0
  %1520 = vmatpush2.msra.mxu0 0.0
  %1521 = vmatprep.subr.mxu0 0.0
  %1522 = vmatpush2.msra.mxu0 0.0
  %1523 = vmatprep.subr.mxu0 0.0
  %1524 = vmatpush2.msra.mxu0 0.0
  %1525 = vmatprep.subr.mxu0 0.0
  %1526 = vmatpush2.msra.mxu0 0.0
  %1527 = vmatprep.subr.mxu0 0.0
  %1528 = vmatpush2.msra.mxu0 0.0
  %1529 = vmatprep.subr.mxu0 0.0
  %1530 = vmatpush2.msra.mxu0 0.0
  %1531 = vmatprep.mubr.f32.mxu0 0.0
  %1532 = vmatmul.mubr.f32.gmra.mxu0 %v1458
  %v1533 = vpop.f32.mrf.mxu0
  %v1534 = vadd.f32 0.0, %v1533
  %v1535 = vpop.f32.mrf.mxu0
  %v1536 = vadd.f32 0.0, %v1535
  %1537 = vmatprep.mubr.f32.mxu0 0.0
  %1538 = vmatmul.mubr.f32.gmra.mxu0 %v1461
  %v1539 = vpop.f32.mrf.mxu0
  %v1540 = vadd.f32 0.0, %v1539
  %v1541 = vpop.f32.mrf.mxu0
  %v1542 = vadd.f32 0.0, %v1541
  %1543 = vdwg.mxu0
  %v1544 = vadd.f32 %v1440, %v1534
  %v1545 = vadd.f32 %v1442, %v1536
  %v1546 = vadd.f32 %v1446, %v1540
  %v1547 = vadd.f32 %v1448, %v1542
  %v1548 = vld [vmem:[%s5 + $0x30] sm:$0xff]
  %v1549 = vld [vmem:[%s5 + $0x38] sm:$0xff]
  %v1550 = vld [vmem:[#allocation3 + $0x10] sm:$0xf]
  %v1551 = vld [vmem:[#allocation3 + $0x18] sm:$0xf]
  %v1553 = vsel %vm1272, %v1548, 0
  %v1556 = vsel %vm1272, %v1549, 0
  %v1559 = vsel %vm1279, %v1550, 0
  %v1562 = vsel %vm1279, %v1551, 0
  %1564 = vmatprep.subr.mxu0 0.0
  %1565 = vmatpush1.msra.mxu0 0.0
  %1566 = vmatprep.subr.mxu0 0.0
  %1567 = vmatpush1.msra.mxu0 0.0
  %1568 = vmatprep.subr.mxu0 0.0
  %1569 = vmatpush1.msra.mxu0 0.0
  %1570 = vmatprep.subr.mxu0 0.0
  %1571 = vmatpush1.msra.mxu0 0.0
  %1572 = vmatprep.subr.mxu0 0.0
  %1573 = vmatpush1.msra.mxu0 0.0
  %1574 = vmatprep.subr.mxu0 0.0
  %1575 = vmatpush1.msra.mxu0 0.0
  %1576 = vmatprep.subr.mxu0 0.0
  %1577 = vmatpush1.msra.mxu0 0.0
  %1578 = vmatprep.subr.mxu0 0.0
  %1579 = vmatpush1.msra.mxu0 0.0
  %1580 = vmatprep.subr.mxu0 0.0
  %1581 = vmatpush1.msra.mxu0 0.0
  %1582 = vmatprep.subr.mxu0 0.0
  %1583 = vmatpush1.msra.mxu0 0.0
  %1584 = vmatprep.subr.mxu0 0.0
  %1585 = vmatpush1.msra.mxu0 0.0
  %1586 = vmatprep.subr.mxu0 0.0
  %1587 = vmatpush1.msra.mxu0 0.0
  %1588 = vmatprep.subr.mxu0 0.0
  %1589 = vmatpush1.msra.mxu0 0.0
  %1590 = vmatprep.subr.mxu0 0.0
  %1591 = vmatpush1.msra.mxu0 0.0
  %1592 = vmatprep.subr.mxu0 0.0
  %1593 = vmatpush1.msra.mxu0 0.0
  %1594 = vmatprep.subr.mxu0 %v1562
  %1595 = vmatpush1.msra.mxu0 %v1559
  %1596 = vmatprep.subr.mxu0 0.0
  %1597 = vmatpush2.msra.mxu0 0.0
  %1598 = vmatprep.subr.mxu0 0.0
  %1599 = vmatpush2.msra.mxu0 0.0
  %1600 = vmatprep.subr.mxu0 0.0
  %1601 = vmatpush2.msra.mxu0 0.0
  %1602 = vmatprep.subr.mxu0 0.0
  %1603 = vmatpush2.msra.mxu0 0.0
  %1604 = vmatprep.subr.mxu0 0.0
  %1605 = vmatpush2.msra.mxu0 0.0
  %1606 = vmatprep.subr.mxu0 0.0
  %1607 = vmatpush2.msra.mxu0 0.0
  %1608 = vmatprep.subr.mxu0 0.0
  %1609 = vmatpush2.msra.mxu0 0.0
  %1610 = vmatprep.subr.mxu0 0.0
  %1611 = vmatpush2.msra.mxu0 0.0
  %1612 = vmatprep.subr.mxu0 0.0
  %1613 = vmatpush2.msra.mxu0 0.0
  %1614 = vmatprep.subr.mxu0 0.0
  %1615 = vmatpush2.msra.mxu0 0.0
  %1616 = vmatprep.subr.mxu0 0.0
  %1617 = vmatpush2.msra.mxu0 0.0
  %1618 = vmatprep.subr.mxu0 0.0
  %1619 = vmatpush2.msra.mxu0 0.0
  %1620 = vmatprep.subr.mxu0 0.0
  %1621 = vmatpush2.msra.mxu0 0.0
  %1622 = vmatprep.subr.mxu0 0.0
  %1623 = vmatpush2.msra.mxu0 0.0
  %1624 = vmatprep.subr.mxu0 0.0
  %1625 = vmatpush2.msra.mxu0 0.0
  %1626 = vmatprep.subr.mxu0 0.0
  %1627 = vmatpush2.msra.mxu0 0.0
  %1628 = vmatprep.mubr.f32.mxu0 0.0
  %1629 = vmatmul.mubr.f32.gmra.mxu0 %v1553
  %v1630 = vpop.f32.mrf.mxu0
  %v1631 = vadd.f32 0.0, %v1630
  %v1632 = vpop.f32.mrf.mxu0
  %v1633 = vadd.f32 0.0, %v1632
  %1634 = vmatprep.mubr.f32.mxu0 0.0
  %1635 = vmatmul.mubr.f32.gmra.mxu0 %v1556
  %v1636 = vpop.f32.mrf.mxu0
  %v1637 = vadd.f32 0.0, %v1636
  %v1638 = vpop.f32.mrf.mxu0
  %v1639 = vadd.f32 0.0, %v1638
  %1640 = vdwg.mxu0
  %v1641 = vadd.f32 %v1544, %v1631
  %v1642 = vadd.f32 %v1545, %v1633
  %v1643 = vadd.f32 %v1546, %v1637
  %v1644 = vadd.f32 %v1547, %v1639
  %v1645 = vld [vmem:[%s5 + $0x40] sm:$0xff]
  %v1646 = vld [vmem:[%s5 + $0x48] sm:$0xff]
  %v1647 = vld [vmem:[#allocation3 + $0x10] sm:$0xf0]
  %v1648 = vld [vmem:[#allocation3 + $0x18] sm:$0xf0]
  %v1651 = vrot.slane %v1647, 4
  %v1652 = vrot.slane %v1648, 4
  %v1654 = vsel %vm1272, %v1645, 0
  %v1657 = vsel %vm1272, %v1646, 0
  %v1659 = vsel %vm1279, %v1651, 0
  %v1661 = vsel %vm1279, %v1652, 0
  %1663 = vmatprep.subr.mxu0 0.0
  %1664 = vmatpush1.msra.mxu0 0.0
  %1665 = vmatprep.subr.mxu0 0.0
  %1666 = vmatpush1.msra.mxu0 0.0
  %1667 = vmatprep.subr.mxu0 0.0
  %1668 = vmatpush1.msra.mxu0 0.0
  %1669 = vmatprep.subr.mxu0 0.0
  %1670 = vmatpush1.msra.mxu0 0.0
  %1671 = vmatprep.subr.mxu0 0.0
  %1672 = vmatpush1.msra.mxu0 0.0
  %1673 = vmatprep.subr.mxu0 0.0
  %1674 = vmatpush1.msra.mxu0 0.0
  %1675 = vmatprep.subr.mxu0 0.0
  %1676 = vmatpush1.msra.mxu0 0.0
  %1677 = vmatprep.subr.mxu0 0.0
  %1678 = vmatpush1.msra.mxu0 0.0
  %1679 = vmatprep.subr.mxu0 0.0
  %1680 = vmatpush1.msra.mxu0 0.0
  %1681 = vmatprep.subr.mxu0 0.0
  %1682 = vmatpush1.msra.mxu0 0.0
  %1683 = vmatprep.subr.mxu0 0.0
  %1684 = vmatpush1.msra.mxu0 0.0
  %1685 = vmatprep.subr.mxu0 0.0
  %1686 = vmatpush1.msra.mxu0 0.0
  %1687 = vmatprep.subr.mxu0 0.0
  %1688 = vmatpush1.msra.mxu0 0.0
  %1689 = vmatprep.subr.mxu0 0.0
  %1690 = vmatpush1.msra.mxu0 0.0
  %1691 = vmatprep.subr.mxu0 0.0
  %1692 = vmatpush1.msra.mxu0 0.0
  %1693 = vmatprep.subr.mxu0 %v1661
  %1694 = vmatpush1.msra.mxu0 %v1659
  %1695 = vmatprep.subr.mxu0 0.0
  %1696 = vmatpush2.msra.mxu0 0.0
  %1697 = vmatprep.subr.mxu0 0.0
  %1698 = vmatpush2.msra.mxu0 0.0
  %1699 = vmatprep.subr.mxu0 0.0
  %1700 = vmatpush2.msra.mxu0 0.0
  %1701 = vmatprep.subr.mxu0 0.0
  %1702 = vmatpush2.msra.mxu0 0.0
  %1703 = vmatprep.subr.mxu0 0.0
  %1704 = vmatpush2.msra.mxu0 0.0
  %1705 = vmatprep.subr.mxu0 0.0
  %1706 = vmatpush2.msra.mxu0 0.0
  %1707 = vmatprep.subr.mxu0 0.0
  %1708 = vmatpush2.msra.mxu0 0.0
  %1709 = vmatprep.subr.mxu0 0.0
  %1710 = vmatpush2.msra.mxu0 0.0
  %1711 = vmatprep.subr.mxu0 0.0
  %1712 = vmatpush2.msra.mxu0 0.0
  %1713 = vmatprep.subr.mxu0 0.0
  %1714 = vmatpush2.msra.mxu0 0.0
  %1715 = vmatprep.subr.mxu0 0.0
  %1716 = vmatpush2.msra.mxu0 0.0
  %1717 = vmatprep.subr.mxu0 0.0
  %1718 = vmatpush2.msra.mxu0 0.0
  %1719 = vmatprep.subr.mxu0 0.0
  %1720 = vmatpush2.msra.mxu0 0.0
  %1721 = vmatprep.subr.mxu0 0.0
  %1722 = vmatpush2.msra.mxu0 0.0
  %1723 = vmatprep.subr.mxu0 0.0
  %1724 = vmatpush2.msra.mxu0 0.0
  %1725 = vmatprep.subr.mxu0 0.0
  %1726 = vmatpush2.msra.mxu0 0.0
  %1727 = vmatprep.mubr.f32.mxu0 0.0
  %1728 = vmatmul.mubr.f32.gmra.mxu0 %v1654
  %v1729 = vpop.f32.mrf.mxu0
  %v1730 = vadd.f32 0.0, %v1729
  %v1731 = vpop.f32.mrf.mxu0
  %v1732 = vadd.f32 0.0, %v1731
  %1733 = vmatprep.mubr.f32.mxu0 0.0
  %1734 = vmatmul.mubr.f32.gmra.mxu0 %v1657
  %v1735 = vpop.f32.mrf.mxu0
  %v1736 = vadd.f32 0.0, %v1735
  %v1737 = vpop.f32.mrf.mxu0
  %v1738 = vadd.f32 0.0, %v1737
  %1739 = vdwg.mxu0
  %v1740 = vadd.f32 %v1641, %v1730
  %v1741 = vadd.f32 %v1642, %v1732
  %v1742 = vadd.f32 %v1643, %v1736
  %v1743 = vadd.f32 %v1644, %v1738
  %v1744 = vld [vmem:[%s5 + $0x50] sm:$0xff]
  %v1745 = vld [vmem:[%s5 + $0x58] sm:$0xff]
  %1746 = vrot.lane.b32.xlu0 %v1550, 127
  %v1747 = vpop.permute.xlu0 %1746
  %1748 = vrot.lane.b32.xlu0 %v1551, 127
  %v1749 = vpop.permute.xlu0 %1748
  %v1750 = vsel %vm205, %v1747, %v1749
  %v1752 = vsel %vm1272, %v1744, 0
  %v1755 = vsel %vm1272, %v1745, 0
  %v1757 = vsel %vm1279, %v1750, 0
  %v1759 = vsel %vm1279, %v1749, 0
  %1761 = vmatprep.subr.mxu0 0.0
  %1762 = vmatpush1.msra.mxu0 0.0
  %1763 = vmatprep.subr.mxu0 0.0
  %1764 = vmatpush1.msra.mxu0 0.0
  %1765 = vmatprep.subr.mxu0 0.0
  %1766 = vmatpush1.msra.mxu0 0.0
  %1767 = vmatprep.subr.mxu0 0.0
  %1768 = vmatpush1.msra.mxu0 0.0
  %1769 = vmatprep.subr.mxu0 0.0
  %1770 = vmatpush1.msra.mxu0 0.0
  %1771 = vmatprep.subr.mxu0 0.0
  %1772 = vmatpush1.msra.mxu0 0.0
  %1773 = vmatprep.subr.mxu0 0.0
  %1774 = vmatpush1.msra.mxu0 0.0
  %1775 = vmatprep.subr.mxu0 0.0
  %1776 = vmatpush1.msra.mxu0 0.0
  %1777 = vmatprep.subr.mxu0 0.0
  %1778 = vmatpush1.msra.mxu0 0.0
  %1779 = vmatprep.subr.mxu0 0.0
  %1780 = vmatpush1.msra.mxu0 0.0
  %1781 = vmatprep.subr.mxu0 0.0
  %1782 = vmatpush1.msra.mxu0 0.0
  %1783 = vmatprep.subr.mxu0 0.0
  %1784 = vmatpush1.msra.mxu0 0.0
  %1785 = vmatprep.subr.mxu0 0.0
  %1786 = vmatpush1.msra.mxu0 0.0
  %1787 = vmatprep.subr.mxu0 0.0
  %1788 = vmatpush1.msra.mxu0 0.0
  %1789 = vmatprep.subr.mxu0 0.0
  %1790 = vmatpush1.msra.mxu0 0.0
  %1791 = vmatprep.subr.mxu0 %v1759
  %1792 = vmatpush1.msra.mxu0 %v1757
  %1793 = vmatprep.subr.mxu0 0.0
  %1794 = vmatpush2.msra.mxu0 0.0
  %1795 = vmatprep.subr.mxu0 0.0
  %1796 = vmatpush2.msra.mxu0 0.0
  %1797 = vmatprep.subr.mxu0 0.0
  %1798 = vmatpush2.msra.mxu0 0.0
  %1799 = vmatprep.subr.mxu0 0.0
  %1800 = vmatpush2.msra.mxu0 0.0
  %1801 = vmatprep.subr.mxu0 0.0
  %1802 = vmatpush2.msra.mxu0 0.0
  %1803 = vmatprep.subr.mxu0 0.0
  %1804 = vmatpush2.msra.mxu0 0.0
  %1805 = vmatprep.subr.mxu0 0.0
  %1806 = vmatpush2.msra.mxu0 0.0
  %1807 = vmatprep.subr.mxu0 0.0
  %1808 = vmatpush2.msra.mxu0 0.0
  %1809 = vmatprep.subr.mxu0 0.0
  %1810 = vmatpush2.msra.mxu0 0.0
  %1811 = vmatprep.subr.mxu0 0.0
  %1812 = vmatpush2.msra.mxu0 0.0
  %1813 = vmatprep.subr.mxu0 0.0
  %1814 = vmatpush2.msra.mxu0 0.0
  %1815 = vmatprep.subr.mxu0 0.0
  %1816 = vmatpush2.msra.mxu0 0.0
  %1817 = vmatprep.subr.mxu0 0.0
  %1818 = vmatpush2.msra.mxu0 0.0
  %1819 = vmatprep.subr.mxu0 0.0
  %1820 = vmatpush2.msra.mxu0 0.0
  %1821 = vmatprep.subr.mxu0 0.0
  %1822 = vmatpush2.msra.mxu0 0.0
  %1823 = vmatprep.subr.mxu0 0.0
  %1824 = vmatpush2.msra.mxu0 0.0
  %1825 = vmatprep.mubr.f32.mxu0 0.0
  %1826 = vmatmul.mubr.f32.gmra.mxu0 %v1752
  %v1827 = vpop.f32.mrf.mxu0
  %v1828 = vadd.f32 0.0, %v1827
  %v1829 = vpop.f32.mrf.mxu0
  %v1830 = vadd.f32 0.0, %v1829
  %1831 = vmatprep.mubr.f32.mxu0 0.0
  %1832 = vmatmul.mubr.f32.gmra.mxu0 %v1755
  %v1833 = vpop.f32.mrf.mxu0
  %v1834 = vadd.f32 0.0, %v1833
  %v1835 = vpop.f32.mrf.mxu0
  %v1836 = vadd.f32 0.0, %v1835
  %1837 = vdwg.mxu0
  %v1838 = vadd.f32 %v1740, %v1828
  %v1839 = vadd.f32 %v1741, %v1830
  %v1840 = vadd.f32 %v1742, %v1834
  %v1841 = vadd.f32 %v1743, %v1836
  %v1842 = vld [vmem:[%s5 + $0x60] sm:$0xff]
  %v1843 = vld [vmem:[%s5 + $0x68] sm:$0xff]
  %1844 = vrot.lane.b32.xlu0 %v1262, 119
  %v1845 = vpop.permute.xlu0 %1844
  %1846 = vrot.lane.b32.xlu0 %v1263, 119
  %v1847 = vpop.permute.xlu0 %1846
  %v1848 = vsel %vm534, %v1845, %v1847
  %v1850 = vsel %vm1272, %v1842, 0
  %v1853 = vsel %vm1272, %v1843, 0
  %v1855 = vsel %vm1279, %v1848, 0
  %v1857 = vsel %vm1279, %v1847, 0
  %1859 = vmatprep.subr.mxu0 0.0
  %1860 = vmatpush1.msra.mxu0 0.0
  %1861 = vmatprep.subr.mxu0 0.0
  %1862 = vmatpush1.msra.mxu0 0.0
  %1863 = vmatprep.subr.mxu0 0.0
  %1864 = vmatpush1.msra.mxu0 0.0
  %1865 = vmatprep.subr.mxu0 0.0
  %1866 = vmatpush1.msra.mxu0 0.0
  %1867 = vmatprep.subr.mxu0 0.0
  %1868 = vmatpush1.msra.mxu0 0.0
  %1869 = vmatprep.subr.mxu0 0.0
  %1870 = vmatpush1.msra.mxu0 0.0
  %1871 = vmatprep.subr.mxu0 0.0
  %1872 = vmatpush1.msra.mxu0 0.0
  %1873 = vmatprep.subr.mxu0 0.0
  %1874 = vmatpush1.msra.mxu0 0.0
  %1875 = vmatprep.subr.mxu0 0.0
  %1876 = vmatpush1.msra.mxu0 0.0
  %1877 = vmatprep.subr.mxu0 0.0
  %1878 = vmatpush1.msra.mxu0 0.0
  %1879 = vmatprep.subr.mxu0 0.0
  %1880 = vmatpush1.msra.mxu0 0.0
  %1881 = vmatprep.subr.mxu0 0.0
  %1882 = vmatpush1.msra.mxu0 0.0
  %1883 = vmatprep.subr.mxu0 0.0
  %1884 = vmatpush1.msra.mxu0 0.0
  %1885 = vmatprep.subr.mxu0 0.0
  %1886 = vmatpush1.msra.mxu0 0.0
  %1887 = vmatprep.subr.mxu0 0.0
  %1888 = vmatpush1.msra.mxu0 0.0
  %1889 = vmatprep.subr.mxu0 %v1857
  %1890 = vmatpush1.msra.mxu0 %v1855
  %1891 = vmatprep.subr.mxu0 0.0
  %1892 = vmatpush2.msra.mxu0 0.0
  %1893 = vmatprep.subr.mxu0 0.0
  %1894 = vmatpush2.msra.mxu0 0.0
  %1895 = vmatprep.subr.mxu0 0.0
  %1896 = vmatpush2.msra.mxu0 0.0
  %1897 = vmatprep.subr.mxu0 0.0
  %1898 = vmatpush2.msra.mxu0 0.0
  %1899 = vmatprep.subr.mxu0 0.0
  %1900 = vmatpush2.msra.mxu0 0.0
  %1901 = vmatprep.subr.mxu0 0.0
  %1902 = vmatpush2.msra.mxu0 0.0
  %1903 = vmatprep.subr.mxu0 0.0
  %1904 = vmatpush2.msra.mxu0 0.0
  %1905 = vmatprep.subr.mxu0 0.0
  %1906 = vmatpush2.msra.mxu0 0.0
  %1907 = vmatprep.subr.mxu0 0.0
  %1908 = vmatpush2.msra.mxu0 0.0
  %1909 = vmatprep.subr.mxu0 0.0
  %1910 = vmatpush2.msra.mxu0 0.0
  %1911 = vmatprep.subr.mxu0 0.0
  %1912 = vmatpush2.msra.mxu0 0.0
  %1913 = vmatprep.subr.mxu0 0.0
  %1914 = vmatpush2.msra.mxu0 0.0
  %1915 = vmatprep.subr.mxu0 0.0
  %1916 = vmatpush2.msra.mxu0 0.0
  %1917 = vmatprep.subr.mxu0 0.0
  %1918 = vmatpush2.msra.mxu0 0.0
  %1919 = vmatprep.subr.mxu0 0.0
  %1920 = vmatpush2.msra.mxu0 0.0
  %1921 = vmatprep.subr.mxu0 0.0
  %1922 = vmatpush2.msra.mxu0 0.0
  %1923 = vmatprep.mubr.f32.mxu0 0.0
  %1924 = vmatmul.mubr.f32.gmra.mxu0 %v1850
  %v1925 = vpop.f32.mrf.mxu0
  %v1926 = vadd.f32 0.0, %v1925
  %v1927 = vpop.f32.mrf.mxu0
  %v1928 = vadd.f32 0.0, %v1927
  %1929 = vmatprep.mubr.f32.mxu0 0.0
  %1930 = vmatmul.mubr.f32.gmra.mxu0 %v1853
  %v1931 = vpop.f32.mrf.mxu0
  %v1932 = vadd.f32 0.0, %v1931
  %v1933 = vpop.f32.mrf.mxu0
  %v1934 = vadd.f32 0.0, %v1933
  %1935 = vdwg.mxu0
  %v1936 = vadd.f32 %v1838, %v1926
  %v1937 = vadd.f32 %v1839, %v1928
  %v1938 = vadd.f32 %v1840, %v1932
  %v1939 = vadd.f32 %v1841, %v1934
  %v1940 = vld [vmem:[%s5 + $0x70] sm:$0xff]
  %v1941 = vld [vmem:[%s5 + $0x78] sm:$0xff]
  %1942 = vrot.lane.b32.xlu0 %v1270, 119
  %v1943 = vpop.permute.xlu0 %1942
  %1944 = vrot.lane.b32.xlu0 %v1271, 119
  %v1945 = vpop.permute.xlu0 %1944
  %v1946 = vsel %vm534, %v1943, %v1945
  %v1948 = vsel %vm1272, %v1940, 0
  %v1951 = vsel %vm1272, %v1941, 0
  %v1953 = vsel %vm1279, %v1946, 0
  %v1955 = vsel %vm1279, %v1945, 0
  %1957 = vmatprep.subr.mxu0 0.0
  %1958 = vmatpush1.msra.mxu0 0.0
  %1959 = vmatprep.subr.mxu0 0.0
  %1960 = vmatpush1.msra.mxu0 0.0
  %1961 = vmatprep.subr.mxu0 0.0
  %1962 = vmatpush1.msra.mxu0 0.0
  %1963 = vmatprep.subr.mxu0 0.0
  %1964 = vmatpush1.msra.mxu0 0.0
  %1965 = vmatprep.subr.mxu0 0.0
  %1966 = vmatpush1.msra.mxu0 0.0
  %1967 = vmatprep.subr.mxu0 0.0
  %1968 = vmatpush1.msra.mxu0 0.0
  %1969 = vmatprep.subr.mxu0 0.0
  %1970 = vmatpush1.msra.mxu0 0.0
  %1971 = vmatprep.subr.mxu0 0.0
  %1972 = vmatpush1.msra.mxu0 0.0
  %1973 = vmatprep.subr.mxu0 0.0
  %1974 = vmatpush1.msra.mxu0 0.0
  %1975 = vmatprep.subr.mxu0 0.0
  %1976 = vmatpush1.msra.mxu0 0.0
  %1977 = vmatprep.subr.mxu0 0.0
  %1978 = vmatpush1.msra.mxu0 0.0
  %1979 = vmatprep.subr.mxu0 0.0
  %1980 = vmatpush1.msra.mxu0 0.0
  %1981 = vmatprep.subr.mxu0 0.0
  %1982 = vmatpush1.msra.mxu0 0.0
  %1983 = vmatprep.subr.mxu0 0.0
  %1984 = vmatpush1.msra.mxu0 0.0
  %1985 = vmatprep.subr.mxu0 0.0
  %1986 = vmatpush1.msra.mxu0 0.0
  %1987 = vmatprep.subr.mxu0 %v1955
  %1988 = vmatpush1.msra.mxu0 %v1953
  %1989 = vmatprep.subr.mxu0 0.0
  %1990 = vmatpush2.msra.mxu0 0.0
  %1991 = vmatprep.subr.mxu0 0.0
  %1992 = vmatpush2.msra.mxu0 0.0
  %1993 = vmatprep.subr.mxu0 0.0
  %1994 = vmatpush2.msra.mxu0 0.0
  %1995 = vmatprep.subr.mxu0 0.0
  %1996 = vmatpush2.msra.mxu0 0.0
  %1997 = vmatprep.subr.mxu0 0.0
  %1998 = vmatpush2.msra.mxu0 0.0
  %1999 = vmatprep.subr.mxu0 0.0
  %2000 = vmatpush2.msra.mxu0 0.0
  %2001 = vmatprep.subr.mxu0 0.0
  %2002 = vmatpush2.msra.mxu0 0.0
  %2003 = vmatprep.subr.mxu0 0.0
  %2004 = vmatpush2.msra.mxu0 0.0
  %2005 = vmatprep.subr.mxu0 0.0
  %2006 = vmatpush2.msra.mxu0 0.0
  %2007 = vmatprep.subr.mxu0 0.0
  %2008 = vmatpush2.msra.mxu0 0.0
  %2009 = vmatprep.subr.mxu0 0.0
  %2010 = vmatpush2.msra.mxu0 0.0
  %2011 = vmatprep.subr.mxu0 0.0
  %2012 = vmatpush2.msra.mxu0 0.0
  %2013 = vmatprep.subr.mxu0 0.0
  %2014 = vmatpush2.msra.mxu0 0.0
  %2015 = vmatprep.subr.mxu0 0.0
  %2016 = vmatpush2.msra.mxu0 0.0
  %2017 = vmatprep.subr.mxu0 0.0
  %2018 = vmatpush2.msra.mxu0 0.0
  %2019 = vmatprep.subr.mxu0 0.0
  %2020 = vmatpush2.msra.mxu0 0.0
  %2021 = vmatprep.mubr.f32.mxu0 0.0
  %2022 = vmatmul.mubr.f32.gmra.mxu0 %v1948
  %v2023 = vpop.f32.mrf.mxu0
  %v2024 = vadd.f32 0.0, %v2023
  %v2025 = vpop.f32.mrf.mxu0
  %v2026 = vadd.f32 0.0, %v2025
  %2027 = vmatprep.mubr.f32.mxu0 0.0
  %2028 = vmatmul.mubr.f32.gmra.mxu0 %v1951
  %v2029 = vpop.f32.mrf.mxu0
  %v2030 = vadd.f32 0.0, %v2029
  %v2031 = vpop.f32.mrf.mxu0
  %v2032 = vadd.f32 0.0, %v2031
  %2033 = vdwg.mxu0
  %v2034 = vadd.f32 %v1936, %v2024
  %v2035 = vadd.f32 %v1937, %v2026
  %v2036 = vadd.f32 %v1938, %v2030
  %v2037 = vadd.f32 %v1939, %v2032
  %v2038 = vld [vmem:[%s5 + $0x80] sm:$0xff]
  %v2039 = vld [vmem:[%s5 + $0x88] sm:$0xff]
  %2040 = vrot.lane.b32.xlu0 %v1262, 118
  %v2041 = vpop.permute.xlu0 %2040
  %2042 = vrot.lane.b32.xlu0 %v1263, 118
  %v2043 = vpop.permute.xlu0 %2042
  %v2044 = vsel %vm705, %v2041, %v2043
  %v2046 = vsel %vm1272, %v2038, 0
  %v2049 = vsel %vm1272, %v2039, 0
  %v2051 = vsel %vm1279, %v2044, 0
  %v2053 = vsel %vm1279, %v2043, 0
  %2055 = vmatprep.subr.mxu0 0.0
  %2056 = vmatpush1.msra.mxu0 0.0
  %2057 = vmatprep.subr.mxu0 0.0
  %2058 = vmatpush1.msra.mxu0 0.0
  %2059 = vmatprep.subr.mxu0 0.0
  %2060 = vmatpush1.msra.mxu0 0.0
  %2061 = vmatprep.subr.mxu0 0.0
  %2062 = vmatpush1.msra.mxu0 0.0
  %2063 = vmatprep.subr.mxu0 0.0
  %2064 = vmatpush1.msra.mxu0 0.0
  %2065 = vmatprep.subr.mxu0 0.0
  %2066 = vmatpush1.msra.mxu0 0.0
  %2067 = vmatprep.subr.mxu0 0.0
  %2068 = vmatpush1.msra.mxu0 0.0
  %2069 = vmatprep.subr.mxu0 0.0
  %2070 = vmatpush1.msra.mxu0 0.0
  %2071 = vmatprep.subr.mxu0 0.0
  %2072 = vmatpush1.msra.mxu0 0.0
  %2073 = vmatprep.subr.mxu0 0.0
  %2074 = vmatpush1.msra.mxu0 0.0
  %2075 = vmatprep.subr.mxu0 0.0
  %2076 = vmatpush1.msra.mxu0 0.0
  %2077 = vmatprep.subr.mxu0 0.0
  %2078 = vmatpush1.msra.mxu0 0.0
  %2079 = vmatprep.subr.mxu0 0.0
  %2080 = vmatpush1.msra.mxu0 0.0
  %2081 = vmatprep.subr.mxu0 0.0
  %2082 = vmatpush1.msra.mxu0 0.0
  %2083 = vmatprep.subr.mxu0 0.0
  %2084 = vmatpush1.msra.mxu0 0.0
  %2085 = vmatprep.subr.mxu0 %v2053
  %2086 = vmatpush1.msra.mxu0 %v2051
  %2087 = vmatprep.subr.mxu0 0.0
  %2088 = vmatpush2.msra.mxu0 0.0
  %2089 = vmatprep.subr.mxu0 0.0
  %2090 = vmatpush2.msra.mxu0 0.0
  %2091 = vmatprep.subr.mxu0 0.0
  %2092 = vmatpush2.msra.mxu0 0.0
  %2093 = vmatprep.subr.mxu0 0.0
  %2094 = vmatpush2.msra.mxu0 0.0
  %2095 = vmatprep.subr.mxu0 0.0
  %2096 = vmatpush2.msra.mxu0 0.0
  %2097 = vmatprep.subr.mxu0 0.0
  %2098 = vmatpush2.msra.mxu0 0.0
  %2099 = vmatprep.subr.mxu0 0.0
  %2100 = vmatpush2.msra.mxu0 0.0
  %2101 = vmatprep.subr.mxu0 0.0
  %2102 = vmatpush2.msra.mxu0 0.0
  %2103 = vmatprep.subr.mxu0 0.0
  %2104 = vmatpush2.msra.mxu0 0.0
  %2105 = vmatprep.subr.mxu0 0.0
  %2106 = vmatpush2.msra.mxu0 0.0
  %2107 = vmatprep.subr.mxu0 0.0
  %2108 = vmatpush2.msra.mxu0 0.0
  %2109 = vmatprep.subr.mxu0 0.0
  %2110 = vmatpush2.msra.mxu0 0.0
  %2111 = vmatprep.subr.mxu0 0.0
  %2112 = vmatpush2.msra.mxu0 0.0
  %2113 = vmatprep.subr.mxu0 0.0
  %2114 = vmatpush2.msra.mxu0 0.0
  %2115 = vmatprep.subr.mxu0 0.0
  %2116 = vmatpush2.msra.mxu0 0.0
  %2117 = vmatprep.subr.mxu0 0.0
  %2118 = vmatpush2.msra.mxu0 0.0
  %2119 = vmatprep.mubr.f32.mxu0 0.0
  %2120 = vmatmul.mubr.f32.gmra.mxu0 %v2046
  %v2121 = vpop.f32.mrf.mxu0
  %v2122 = vadd.f32 0.0, %v2121
  %v2123 = vpop.f32.mrf.mxu0
  %v2124 = vadd.f32 0.0, %v2123
  %2125 = vmatprep.mubr.f32.mxu0 0.0
  %2126 = vmatmul.mubr.f32.gmra.mxu0 %v2049
  %v2127 = vpop.f32.mrf.mxu0
  %v2128 = vadd.f32 0.0, %v2127
  %v2129 = vpop.f32.mrf.mxu0
  %v2130 = vadd.f32 0.0, %v2129
  %2131 = vdwg.mxu0
  %v2132 = vadd.f32 %v2034, %v2122
  %v2133 = vadd.f32 %v2035, %v2124
  %v2134 = vadd.f32 %v2036, %v2128
  %v2135 = vadd.f32 %v2037, %v2130
  %v2136 = vld [vmem:[#allocation4] sm:$0x1]
  %v2138 = vlaneseq
  %v2139 = vshrl.u32 %v2138, 7
  %v2140 = vsub.s32 0, %v2139
  %v2141 = vrot.slane %v2136, %v2140
  %2142 = vset.pattern.permute.xlu0 0
  %2143 = vperm.xlu0 %2142, %v2141
  %v2144 = vpop.permute.xlu0 %2143
  %v2146 = vadd.f32 %v2132, %v2144
  %v2147 = vadd.f32 %v2133, %v2144
  %v2148 = vadd.f32 %v2134, %v2144
  %v2149 = vadd.f32 %v2135, %v2144
  %v2150 = vsel %vm856, %v2146, 0.0
  %v2151 = vsel %vm857, %v2147, 0.0
  %v2152 = vsel %vm856, %v2148, 0.0
  %v2153 = vsel %vm857, %v2149, 0.0
  %2154 = vst [vmem:[%s8] sm:$0xff] %v2150
  %2155 = vst.msk [vmem:[%s8 + $0x8] sm:$0xff] %vm861, %v2151
  %2156 = vst [vmem:[%s8 + $0x10] sm:$0xff] %v2152
  %2157 = vst.msk [vmem:[%s8 + $0x18] sm:$0xff] %vm861, %v2153
  // Predicated region
  $region34: #{model_forward.1} parent=0 // pred_check
    _
  $region35: #{model_forward.1} parent=0 // pred_check_branch
    %2159 = sbr.rel (0) target = $region37
  $region36: #{model_forward.1} parent=0 // pred_region
    _
  $region37: #{model_forward.1} parent=0 // pred_fallthru
    _
  // Predicated region
  $region38: #{model_forward.1} parent=0 // pred_check
    _
  $region39: #{model_forward.1} parent=0 // pred_check_branch
    %2161 = sbr.rel (0) target = $region41
  $region40: #{model_forward.1} parent=0 // pred_region
    _
  $region41: #{model_forward.1} parent=0 // pred_fallthru
    _

</llo_original>
